<compile_context>
chip_gen: v5e
topology: v5e:2x2
jax: 0.10.0
libtpu: 0.0.40
codegen_flags: <defaults>
</compile_context>

<pallas_src>
import functools

import jax
import jax.numpy as jnp
from jax.experimental import pallas as pl
from jax.experimental.pallas import tpu as pltpu


_BN_EPS = 1e-5


def _round_up(x, m):
    return (x + m - 1) // m * m


def _device_kind():
    try:
        return jax.devices()[0].device_kind.lower()
    except Exception:
        return ""


_KIND = _device_kind()
# bf16 VPU prologue on v6e/v7x; keep the f32 prologue on v5-class (no bf16 VALU).
_BF16_PROLOGUE = any(t in _KIND for t in ("v6", "v7", "7x"))
_IS_V5 = ("v5" in _KIND) or ("v4" in _KIND) or ("v3" in _KIND)


# ---------------------------------------------------------------------------
# Fused conv-as-matmul kernel:
#   O = act(A * ks + kt) @ B + bias      (bf16 MXU operands, f32 accumulate)
# with optional per-M-segment (per-view) input affine and optional
# per-M-segment single-pass BatchNorm statistics (sum / sum-of-squares).
# ---------------------------------------------------------------------------
def _conv_matmul_kernel(*refs, act, fuse_affine, n_seg, m_seg, with_stats,
                        mask_m, bf16_prologue):
    it = iter(refs)
    a_ref = next(it)
    ks_ref = kt_ref = None
    if fuse_affine:
        ks_ref, kt_ref = next(it), next(it)
    b_ref, bias_ref = next(it), next(it)
    o_ref = next(it)
    stats_ref = next(it) if with_stats else None
    acc_ref = next(it)

    kk = pl.program_id(1)

    @pl.when(kk == 0)
    def _():
        acc_ref[...] = jnp.zeros_like(acc_ref)

    cdt = jnp.bfloat16 if bf16_prologue else jnp.float32
    a = a_ref[...]
    if fuse_affine or act != "linear":
        a = a.astype(cdt)
    if fuse_affine:
        if n_seg == 1:
            scale = ks_ref[...].astype(cdt)          # (1, tk) broadcasts over M
            shift = kt_ref[...].astype(cdt)
        else:
            # Per-view (contiguous M-segment) pending BatchNorm affine, built
            # with a trace-time loop of selects (n_seg is tiny).
            rows = jax.lax.broadcasted_iota(jnp.int32, a.shape, 0)
            scale = jnp.broadcast_to(ks_ref[n_seg - 1:n_seg, :].astype(cdt),
                                     a.shape)
            shift = jnp.broadcast_to(kt_ref[n_seg - 1:n_seg, :].astype(cdt),
                                     a.shape)
            for v in range(n_seg - 2, -1, -1):
                sel = rows < (v + 1) * m_seg
                scale = jnp.where(sel, ks_ref[v:v + 1, :].astype(cdt), scale)
                shift = jnp.where(sel, kt_ref[v:v + 1, :].astype(cdt), shift)
        a = a * scale + shift
    if act == "lrelu":
        a = jnp.where(a > 0, a, a * 0.2)
    elif act == "relu":
        a = jnp.maximum(a, 0.0)
    acc_ref[...] += jnp.dot(a.astype(jnp.bfloat16), b_ref[...],
                            preferred_element_type=jnp.float32)

    @pl.when(kk == pl.num_programs(1) - 1)
    def _():
        y = acc_ref[...] + bias_ref[...]             # epilogue: conv bias
        yo = y.astype(o_ref.dtype)
        o_ref[...] = yo
        if with_stats:
            # Per-segment sum / sum-of-squares over the *stored* values, so the
            # downstream normalization is self-consistent with what it reads.
            ys = yo.astype(jnp.float32)
            rows = jax.lax.broadcasted_iota(jnp.int32, ys.shape, 0)
            pieces = []
            for v in range(n_seg):
                lo, hi = v * m_seg, (v + 1) * m_seg
                cond = None
                if v > 0:
                    cond = rows >= lo
                if v < n_seg - 1 or mask_m:
                    c2 = rows < hi
                    cond = c2 if cond is None else jnp.logical_and(cond, c2)
                yv = ys if cond is None else jnp.where(cond, ys, 0.0)
                pieces.append(jnp.sum(yv, axis=0, keepdims=True))
                pieces.append(jnp.sum(yv * yv, axis=0, keepdims=True))
            stats_ref[...] = jnp.concatenate(pieces, axis=0)


def _fused_conv_matmul(a, b, bias, *, act, ks=None, kt=None, n_seg=1,
                       with_stats=False, out_dtype=jnp.bfloat16):
    M, K = a.shape
    Kb, N = b.shape
    assert K == Kb and M % n_seg == 0
    m_seg = M // n_seg
    fuse_affine = ks is not None

    # Single M block: every layer of this block is small after view batching.
    # TODO(synk): tile M with an extra "parallel" grid axis (and per-block
    # stats accumulation) for production-size spatial dims / v7x dual-core.
    Mp = _round_up(M, 16)
    assert Mp <= 1024, "single-M-block kernel sized for small demo shapes"
    Np = _round_up(N, 128)
    tn = 128 if (_IS_V5 or Np % 256) else 256      # v5e MXU is 128 lanes wide
    k_cap = 1024 if _IS_V5 else 2048               # v5e scoped VMEM is small
    if _round_up(K, 128) <= k_cap:                 # collapse k grid when K fits
        Kp = tk = _round_up(K, 128)
    else:
        tk = k_cap
        Kp = _round_up(K, tk)
    tm = Mp

    # Pad only the genuinely misaligned dims.
    if (Mp, Kp) != (M, K):
        a = jnp.pad(a, ((0, Mp - M), (0, Kp - K)))
    if (Kp, Np) != (K, N):
        b = jnp.pad(b, ((0, Kp - K), (0, Np - N)))
    bias2 = bias.reshape(1, N).astype(jnp.float32)
    if Np != N:
        bias2 = jnp.pad(bias2, ((0, 0), (0, Np - N)))

    op_dt = jnp.bfloat16 if _BF16_PROLOGUE else jnp.float32
    in_specs = [pl.BlockSpec((tm, tk), lambda j, k: (0, k))]
    args = [a]
    if fuse_affine:
        ks2 = ks.reshape(n_seg, K).astype(op_dt)
        kt2 = kt.reshape(n_seg, K).astype(op_dt)
        if Kp != K:
            ks2 = jnp.pad(ks2, ((0, 0), (0, Kp - K)))
            kt2 = jnp.pad(kt2, ((0, 0), (0, Kp - K)))
        in_specs += [pl.BlockSpec((n_seg, tk), lambda j, k: (0, k)),
                     pl.BlockSpec((n_seg, tk), lambda j, k: (0, k))]
        args += [ks2, kt2]
    in_specs += [pl.BlockSpec((tk, tn), lambda j, k: (k, j)),
                 pl.BlockSpec((1, tn), lambda j, k: (0, j))]
    args += [b, bias2]

    if with_stats:
        out_shape = (jax.ShapeDtypeStruct((Mp, Np), out_dtype),
                     jax.ShapeDtypeStruct((2 * n_seg, Np), jnp.float32))
        out_specs = (pl.BlockSpec((tm, tn), lambda j, k: (0, j)),
                     pl.BlockSpec((2 * n_seg, tn), lambda j, k: (0, j)))
    else:
        out_shape = jax.ShapeDtypeStruct((Mp, Np), out_dtype)
        out_specs = pl.BlockSpec((tm, tn), lambda j, k: (0, j))

    kernel = functools.partial(
        _conv_matmul_kernel, act=act, fuse_affine=fuse_affine, n_seg=n_seg,
        m_seg=m_seg, with_stats=with_stats, mask_m=(Mp != M),
        bf16_prologue=_BF16_PROLOGUE)

    # Rough double-buffered working-set estimate; only raise the scoped-VMEM
    # limit when the tiles actually need it.
    est = 2 * (tm * tk * a.dtype.itemsize + tk * tn * 2
               + tm * tn * jnp.dtype(out_dtype).itemsize) + tm * tn * 4
    cp = dict(dimension_semantics=("parallel", "arbitrary"))
    if est > 8 * 2**20:
        cp["vmem_limit_bytes"] = min(int(2.5 * est), 100 * 2**20)

    outs = pl.pallas_call(
        kernel,
        out_shape=out_shape,
        grid_spec=pltpu.PrefetchScalarGridSpec(
            num_scalar_prefetch=0,
            grid=(Np // tn, Kp // tk),
            in_specs=in_specs,
            out_specs=out_specs,
            scratch_shapes=[pltpu.VMEM((tm, tn), jnp.float32)]),
        compiler_params=pltpu.CompilerParams(**cp),
    )(*args)

    if with_stats:
        out, stats = outs
        return out[:M, :N], stats[:, :N]
    return outs[:M, :N], None


# ---------------------------------------------------------------------------
# "Lazy" tensors: (raw NHWC values, per-channel BN scale|None, shift|None).
# The pending affine (and the activation that always follows it) is applied in
# the consuming conv kernel's prologue, never as its own elementwise pass.
# ---------------------------------------------------------------------------
def _lazy(raw, scale=None, shift=None):
    return (raw, scale, shift)


def _lazy_concat(a, b):
    ra, sa, ta = a
    rb, sb, tb = b
    raw = jnp.concatenate([ra.astype(jnp.bfloat16), rb.astype(jnp.bfloat16)],
                          axis=-1)
    if sa is None and sb is None:
        return (raw, None, None)
    ca, cb = ra.shape[-1], rb.shape[-1]
    sa = jnp.ones((ca,), jnp.float32) if sa is None else sa
    ta = jnp.zeros((ca,), jnp.float32) if ta is None else ta
    sb = jnp.ones((cb,), jnp.float32) if sb is None else sb
    tb = jnp.zeros((cb,), jnp.float32) if tb is None else tb
    return (raw, jnp.concatenate([sa, sb]), jnp.concatenate([ta, tb]))


def _bn_affine(csum, csq, count, gamma, beta):
    # Training-mode BatchNorm2d from single-pass kernel sums (biased variance).
    mean = csum / count
    var = jnp.maximum(csq / count - mean * mean, 0.0)
    scale = gamma * jax.lax.rsqrt(var + _BN_EPS)
    shift = beta - mean * scale
    return scale, shift


def _bn_affine_from_tensor(y, gamma, beta):
    # Two-pass training-mode BatchNorm2d stats over (N, H, W) (used for the
    # phase-packed transposed convs, where per-column in-kernel sums would mix
    # the extra window origins of the other phases).
    yf = y.astype(jnp.float32)
    mean = jnp.mean(yf, axis=(0, 1, 2))
    var = jnp.mean(jnp.square(yf - mean), axis=(0, 1, 2))
    scale = gamma * jax.lax.rsqrt(var + _BN_EPS)
    shift = beta - mean * scale
    return scale, shift


# ---------------------------------------------------------------------------
# Conv2d(k=4, s=2, p=1, bias=False) over ALL views in ONE fused matmul.
# ---------------------------------------------------------------------------
def _down_conv(views, w_torch, *, in_act, bn=None, out_dtype=jnp.bfloat16):
    V = len(views)
    nb, h, w, cin = views[0][0].shape
    ho, wo = h // 2, w // 2
    cout = w_torch.shape[0]
    ksz = 4
    hp, wp = h + 2, w + 2

    identity = all(v[1] is None for v in views)

    # Per-view spatially padded buffers; pad positions carry a per-channel
    # value the fused prologue maps (back) to 0, matching torch's zero padding
    # of the post-activation conv input.
    bufs = []
    for raw, sc, sh in views:
        raw = raw.astype(jnp.bfloat16)
        if sc is None:
            bufs.append(jnp.pad(raw, ((0, 0), (1, 1), (1, 1), (0, 0))))
        else:
            # TODO(synk): maps to 0 only up to bf16 rounding of -shift/scale
            # (same order as the bf16 A-operand rounding itself).
            fill = (-sh / jnp.where(sc == 0.0, 1.0, sc)).astype(jnp.bfloat16)
            buf = jnp.broadcast_to(fill.reshape(1, 1, 1, cin),
                                   (nb, hp, wp, cin))
            bufs.append(buf.at[:, 1:h + 1, 1:w + 1, :].set(raw))
    buf = jnp.concatenate(bufs, axis=0) if V > 1 else bufs[0]

    # im2col, K ordered (cin, kh, kw) to match the torch weight flatten.
    # TODO(synk): at production shapes build the 16 taps inside the kernel from
    # the padded NHWC tile instead of materializing the im2col slab in HBM.
    cols = []
    for i in range(ksz):
        for j in range(ksz):
            cols.append(buf[:, i:i + 2 * (ho - 1) + 1:2,
                            j:j + 2 * (wo - 1) + 1:2, :])
    patches = jnp.stack(cols, axis=-1).reshape(V * nb * ho * wo,
                                               cin * ksz * ksz)

    wf = w_torch.reshape(cout, cin * ksz * ksz).T.astype(jnp.bfloat16)
    bias = jnp.zeros((cout,), jnp.float32)

    ks = kt = None
    if not identity:
        sc_all = jnp.stack([jnp.ones((cin,), jnp.float32) if s is None
                            else s.astype(jnp.float32) for _, s, _ in views])
        sh_all = jnp.stack([jnp.zeros((cin,), jnp.float32) if t is None
                            else t.astype(jnp.float32) for _, _, t in views])
        if in_act == "linear" and V == 1:
            # No nonlinearity between affine and conv: fold exactly into B/bias
            # and drop the kernel prologue entirely.
            ks_cols = jnp.repeat(sc_all[0], ksz * ksz)
            kt_cols = jnp.repeat(sh_all[0], ksz * ksz)
            wf32 = w_torch.reshape(cout, -1).T.astype(jnp.float32)
            bias = bias + kt_cols @ wf32
            wf = (ks_cols[:, None] * wf32).astype(jnp.bfloat16)
        else:
            ks = jnp.repeat(sc_all, ksz * ksz, axis=1)      # (V, cin*16)
            kt = jnp.repeat(sh_all, ksz * ksz, axis=1)

    y2d, stats = _fused_conv_matmul(patches, wf, bias, act=in_act, ks=ks,
                                    kt=kt, n_seg=V, with_stats=(bn is not None),
                                    out_dtype=out_dtype)
    y = y2d.reshape(V, nb, ho, wo, cout)
    outs = [y[v] for v in range(V)]
    if bn is None:
        return outs, None
    gamma, beta = bn
    count = float(nb * ho * wo)
    affines = [_bn_affine(stats[2 * v], stats[2 * v + 1], count, gamma, beta)
               for v in range(V)]
    return outs, affines


# ---------------------------------------------------------------------------
# ConvTranspose2d(k=4, s=2, p=1) via sub-pixel phase decomposition: ONE fused
# matmul with K = cin*4 and the four 2x2 phase sub-kernels stacked along N
# (N = 4*cout), then a cheap spatial interleave.  The pre-conv ReLU and the
# input's pending BatchNorm affine are fused in the kernel prologue.
# ---------------------------------------------------------------------------
def _up_conv(x_lazy, w_torch, bias=None, *, bn=None, out_dtype=jnp.bfloat16):
    raw, sc, sh = x_lazy
    nb, h, w, cin = raw.shape
    cout = w_torch.shape[1]

    raw = raw.astype(jnp.bfloat16)
    if sc is None:
        buf = jnp.pad(raw, ((0, 0), (1, 1), (1, 1), (0, 0)))
        ks = kt = None
    else:
        # Fill so the fused affine maps pads to a strictly negative value; the
        # ReLU prologue then makes them exactly 0.
        target = -(jnp.abs(sh) + 1.0)
        fill = ((target - sh) / jnp.where(sc == 0.0, 1.0, sc)).astype(jnp.bfloat16)
        buf = jnp.broadcast_to(fill.reshape(1, 1, 1, cin),
                               (nb, h + 2, w + 2, cin))
        buf = buf.at[:, 1:h + 1, 1:w + 1, :].set(raw)
        ks = jnp.repeat(sc.astype(jnp.float32), 4)
        kt = jnp.repeat(sh.astype(jnp.float32), 4)

    # 2x2, stride-1 im2col over the (h+1) x (w+1) phase-window origins.
    cols = []
    for ty in range(2):
        for tx in range(2):
            cols.append(buf[:, ty:ty + h + 1, tx:tx + w + 1, :])
    patches = jnp.stack(cols, axis=-1).reshape(nb * (h + 1) * (w + 1), cin * 4)

    # Phase-stacked weights: output (2a+dy, 2b+dx) reads the 2x2 window whose
    # origin is padded (a+dy, b+dx); its tap (ty, tx) multiplies
    # W[:, :, 3-2*ty-dy, 3-2*tx-dx].
    blocks = []
    for dy in (0, 1):
        for dx in (0, 1):
            taps = [w_torch[:, :, 3 - 2 * ty - dy, 3 - 2 * tx - dx]
                    for ty in (0, 1) for tx in (0, 1)]        # each (cin, cout)
            blocks.append(jnp.stack(taps, axis=1).reshape(cin * 4, cout))
    wf = jnp.concatenate(blocks, axis=1).astype(jnp.bfloat16)  # (cin*4, 4*cout)
    bias4 = (jnp.zeros((4 * cout,), jnp.float32) if bias is None
             else jnp.tile(bias.astype(jnp.float32), 4))

    y2d, _ = _fused_conv_matmul(patches, wf, bias4, act="relu", ks=ks, kt=kt,
                                out_dtype=out_dtype)
    y = y2d.reshape(nb, h + 1, w + 1, 4, cout)
    top = jnp.stack([y[:, :h, :w, 0, :], y[:, :h, 1:, 1, :]], axis=3)
    bot = jnp.stack([y[:, 1:, :w, 2, :], y[:, 1:, 1:, 3, :]], axis=3)
    out = jnp.stack([top.reshape(nb, h, 2 * w, cout),
                     bot.reshape(nb, h, 2 * w, cout)],
                    axis=2).reshape(nb, 2 * h, 2 * w, cout)

    if bn is None:
        return out, None
    gamma, beta = bn
    return out, _bn_affine_from_tensor(out, gamma, beta)


# ---------------------------------------------------------------------------
# The three branches of UnetSkipConnectionBlockOutput.forward
# ---------------------------------------------------------------------------
def _innermost_forward(p, x_lazy, others_lazy):
    # down = [LeakyReLU(0.2), Conv2d(in->inner, 4, 2, 1, bias=False)]  (no BN)
    views = [x_lazy] + list(others_lazy)
    ys, _ = _down_conv(views, p["down_w"], in_act="lrelu",
                       out_dtype=jnp.float32)
    vp = ys[0][..., :30]                                   # torch: x_fv[:, 0:30]
    m3d = jnp.concatenate([y[..., 30:] for y in ys], axis=1)  # cat along H (dim=2)
    m3d = jnp.mean(m3d, axis=1, keepdims=True)                # mean(dim=2, keepdim)
    x_fv = jnp.concatenate([vp, m3d], axis=-1)                # cat along channels
    # up = [ReLU, ConvTranspose2d(inner->outer, 4, 2, 1, bias=False), BN(outer)]
    yu, (usc, ush) = _up_conv(_lazy(x_fv), p["up_w"], bn=p["up_bn"])
    return _lazy_concat((yu, usc, ush), x_lazy), x_fv


def _middle_forward(p, x_lazy, others_lazy, submodule):
    # down = [LeakyReLU(0.2), Conv2d(outer->inner, 4, 2, 1, bias=False), BN(inner)]
    views = [x_lazy] + list(others_lazy)
    ys, affs = _down_conv(views, p["down_w"], in_act="lrelu", bn=p["down_bn"])
    lazies = [(y, a[0], a[1]) for y, a in zip(ys, affs)]
    x, x_fv_inner = submodule(lazies[0], lazies[1:])
    # use_dropout=False (module default): x = upnorm(upconv(uprelu(x)))
    yu, (usc, ush) = _up_conv(x, p["up_w"], bn=p["up_bn"])
    return _lazy_concat((yu, usc, ush), x_lazy), x_fv_inner


def _outermost_forward(p, x_lazy, others_lazy, submodule):
    # down = [Conv2d(input->inner, 4, 2, 1, bias=False)]
    views = [x_lazy] + list(others_lazy)
    ys, _ = _down_conv(views, p["down_w"], in_act="linear")
    lazies = [_lazy(y) for y in ys]
    x, x_fv_inner = submodule(lazies[0], lazies[1:])
    # up = [ReLU, ConvTranspose2d(inner*2->outer, 4, 2, 1, bias=True)]
    out, _ = _up_conv(x, p["up_w"], bias=p["up_b"], out_dtype=jnp.float32)
    return out, x_fv_inner


def unet_skip_block_output_forward(params, x_nchw, *other_nchw):
    to_nhwc = lambda t: jnp.transpose(t.astype(jnp.float32), (0, 2, 3, 1))
    x = _lazy(to_nhwc(x_nchw))
    others = [_lazy(to_nhwc(t)) for t in other_nchw]

    inner = lambda xl, ol: _innermost_forward(params["inner"], xl, ol)
    mid = lambda xl, ol: _middle_forward(params["mid"], xl, ol, inner)
    out_nhwc, fv_nhwc = _outermost_forward(params["outer"], x, others, mid)

    out = jnp.transpose(out_nhwc, (0, 3, 1, 2))                 # NHWC -> NCHW
    fv = jnp.transpose(fv_nhwc.astype(jnp.float32), (0, 3, 1, 2))
    return out, fv


# ---------------------------------------------------------------------------
# Parameters (deterministic small-scale configuration)
#   outermost: input_nc=4,  inner_nc=16, outer_nc=8
#   middle   :              inner_nc=32, outer_nc=16 (input_nc=outer_nc)
#   innermost:              inner_nc=32, outer_nc=32 (input_nc=outer_nc)
# ---------------------------------------------------------------------------
def init_params(key):
    ks = jax.random.split(key, 8)

    def conv_w(k, cout, cin):      # Conv2d weight (Cout, Cin, 4, 4)
        return 0.02 * jax.random.normal(k, (cout, cin, 4, 4), jnp.float32)

    def convt_w(k, cin, cout):     # ConvTranspose2d weight (Cin, Cout, 4, 4)
        return 0.02 * jax.random.normal(k, (cin, cout, 4, 4), jnp.float32)

    return {
        "outer": {
            "down_w": conv_w(ks[0], 16, 4),                       # Conv2d(4, 16)
            "up_w": convt_w(ks[1], 32, 8),                        # ConvT(32, 8)
            "up_b": 0.02 * jax.random.normal(ks[2], (8,), jnp.float32),
        },
        "mid": {
            "down_w": conv_w(ks[3], 32, 16),                      # Conv2d(16, 32)
            "down_bn": (jnp.ones((32,), jnp.float32),
                        jnp.zeros((32,), jnp.float32)),
            "up_w": convt_w(ks[4], 64, 16),                       # ConvT(64, 16)
            "up_bn": (jnp.ones((16,), jnp.float32),
                      jnp.zeros((16,), jnp.float32)),
        },
        "inner": {
            "down_w": conv_w(ks[5], 32, 32),                      # Conv2d(32, 32)
            "up_w": convt_w(ks[6], 32, 32),                       # ConvT(32, 32)
            "up_bn": (jnp.ones((32,), jnp.float32),
                      jnp.zeros((32,), jnp.float32)),
        },
    }


if __name__ == "__main__":
    key = jax.random.PRNGKey(0)
    pk, xk, vk = jax.random.split(key, 3)
    params = init_params(pk)

    # x_orig plus one extra view (the *other_inputs of forward); 8x8 spatial so
    # the innermost downconv output has H=1, as the module's innermost branch
    # requires for its H-dim concat + mean.
    x = jax.random.normal(xk, (2, 4, 8, 8), jnp.float32)
    x_view2 = jax.random.normal(vk, (2, 4, 8, 8), jnp.float32)

    fwd = jax.jit(unet_skip_block_output_forward)
    out, fv = fwd(params, x, x_view2)
    out = jax.block_until_ready(out)
    fv = jax.block_until_ready(fv)

    assert out.shape == (2, 8, 8, 8), out.shape     # outermost up output (NCHW)
    assert fv.shape == (2, 32, 1, 1), fv.shape      # innermost x_fv (NCHW)
    assert bool(jnp.all(jnp.isfinite(out))) and bool(jnp.all(jnp.isfinite(fv)))
    print("KERNEL_OK")
</pallas_src>

<mosaic_0001>
module attributes {stable_mosaic.version = 11 : i64} {
  func.func @_conv_matmul_kernel(%arg0: i32, %arg1: i32, %arg2: memref<64x128xbf16, #tpu.memory_space<vmem>>, %arg3: memref<128x128xbf16, #tpu.memory_space<vmem>>, %arg4: memref<1x128xf32, #tpu.memory_space<vmem>>, %arg5: memref<64x128xbf16, #tpu.memory_space<vmem>>, %arg6: memref<64x128xf32, #tpu.memory_space<vmem>>) attributes {dimension_semantics = [#tpu.dimension_semantics<parallel>, #tpu.dimension_semantics<arbitrary>], iteration_bounds = array<i64: 1, 1>, scalar_prefetch = 0 : i64, scratch_operands = 1 : i64, tpu.core_type = #tpu.core_type<tc>, window_params = [{transform_indices = @transform_0, window_bounds = array<i64: 64, 128>}, {transform_indices = @transform_1, window_bounds = array<i64: 128, 128>}, {transform_indices = @transform_2, window_bounds = array<i64: 1, 128>}, {transform_indices = @transform_3, window_bounds = array<i64: 64, 128>}]} {
    %c0_i32 = arith.constant 0 : i32
    %0 = arith.cmpi eq, %arg1, %c0_i32 : i32
    %1 = arith.extui %0 : i1 to i32
    %c0_i32_0 = arith.constant 0 : i32
    %2 = arith.cmpi ne, %1, %c0_i32_0 : i32
    scf.if %2 {
      %cst_10 = arith.constant 0.000000e+00 : f32
      %12 = vector.broadcast %cst_10 : f32 to vector<64x128xf32>
      %c0_11 = arith.constant 0 : index
      %c0_12 = arith.constant 0 : index
      %13 = vector.load %arg6[%c0_11, %c0_12] : memref<64x128xf32, #tpu.memory_space<vmem>>, vector<64x128xf32>
      tpu.vector_store %arg6[%c0_11, %c0_12], %12 {strides = array<i32>} : memref<64x128xf32, #tpu.memory_space<vmem>>, vector<64x128xf32>,
    } else {
    }
    %c0 = arith.constant 0 : index
    %c0_1 = arith.constant 0 : index
    %3 = vector.load %arg2[%c0, %c0_1] : memref<64x128xbf16, #tpu.memory_space<vmem>>, vector<64x128xbf16>
    %c0_2 = arith.constant 0 : index
    %c0_3 = arith.constant 0 : index
    %4 = vector.load %arg6[%c0_2, %c0_3] : memref<64x128xf32, #tpu.memory_space<vmem>>, vector<64x128xf32>
    %c0_4 = arith.constant 0 : index
    %c0_5 = arith.constant 0 : index
    %5 = vector.load %arg3[%c0_4, %c0_5] : memref<128x128xbf16, #tpu.memory_space<vmem>>, vector<128x128xbf16>
    %cst = arith.constant dense<0.000000e+00> : vector<64x128xf32>
    %6 = tpu.matmul %3, %5, %cst {dimension_numbers = #tpu.dot_dimension_numbers<[1], [0], [0], [1], [0, 0, 1, 1], [], []>} : vector<64x128xbf16>, vector<128x128xbf16>, vector<64x128xf32> -> vector<64x128xf32>
    %7 = arith.addf %4, %6 : vector<64x128xf32>
    %c0_6 = arith.constant 0 : index
    %c0_7 = arith.constant 0 : index
    %8 = vector.load %arg6[%c0_6, %c0_7] : memref<64x128xf32, #tpu.memory_space<vmem>>, vector<64x128xf32>
    tpu.vector_store %arg6[%c0_6, %c0_7], %7 {strides = array<i32>} : memref<64x128xf32, #tpu.memory_space<vmem>>, vector<64x128xf32>,
    %c0_i32_8 = arith.constant 0 : i32
    %9 = arith.cmpi eq, %arg1, %c0_i32_8 : i32
    %10 = arith.extui %9 : i1 to i32
    %c0_i32_9 = arith.constant 0 : i32
    %11 = arith.cmpi ne, %10, %c0_i32_9 : i32
    scf.if %11 {
      %c0_10 = arith.constant 0 : index
      %c0_11 = arith.constant 0 : index
      %12 = vector.load %arg6[%c0_10, %c0_11] : memref<64x128xf32, #tpu.memory_space<vmem>>, vector<64x128xf32>
      %c0_12 = arith.constant 0 : index
      %c0_13 = arith.constant 0 : index
      %13 = vector.load %arg4[%c0_12, %c0_13] : memref<1x128xf32, #tpu.memory_space<vmem>>, vector<1x128xf32>
      %14 = vector.broadcast %13 : vector<1x128xf32> to vector<64x128xf32>
      %15 = arith.addf %12, %14 : vector<64x128xf32>
      %16 = arith.truncf %15 : vector<64x128xf32> to vector<64x128xbf16>
      %c0_14 = arith.constant 0 : index
      %c0_15 = arith.constant 0 : index
      %17 = vector.load %arg5[%c0_14, %c0_15] : memref<64x128xbf16, #tpu.memory_space<vmem>>, vector<64x128xbf16>
      tpu.vector_store %arg5[%c0_14, %c0_15], %16 {strides = array<i32>} : memref<64x128xbf16, #tpu.memory_space<vmem>>, vector<64x128xbf16>,
    } else {
    }
    return
  }
  func.func @transform_0(%arg0: i32, %arg1: i32) -> (i32, i32) {
    %c0_i32 = arith.constant 0 : i32
    %c0_i32_0 = arith.constant 0 : i32
    return %c0_i32, %arg1 : i32, i32
  }
  func.func @transform_1(%arg0: i32, %arg1: i32) -> (i32, i32) {
    %c0_i32 = arith.constant 0 : i32
    return %arg1, %arg0 : i32, i32
  }
  func.func @transform_2(%arg0: i32, %arg1: i32) -> (i32, i32) {
    %c0_i32 = arith.constant 0 : i32
    %c0_i32_0 = arith.constant 0 : i32
    return %c0_i32, %arg0 : i32, i32
  }
  func.func @transform_3(%arg0: i32, %arg1: i32) -> (i32, i32) {
    %c0_i32 = arith.constant 0 : i32
    %c0_i32_0 = arith.constant 0 : i32
    return %c0_i32, %arg0 : i32, i32
  }
}

module attributes {stable_mosaic.version = 11 : i64} {
  func.func @_conv_matmul_kernel(%arg0: i32, %arg1: i32, %arg2: memref<16x256xbf16, #tpu.memory_space<vmem>>, %arg3: memref<256x128xbf16, #tpu.memory_space<vmem>>, %arg4: memref<1x128xf32, #tpu.memory_space<vmem>>, %arg5: memref<16x128xbf16, #tpu.memory_space<vmem>>, %arg6: memref<4x128xf32, #tpu.memory_space<vmem>>, %arg7: memref<16x128xf32, #tpu.memory_space<vmem>>) attributes {dimension_semantics = [#tpu.dimension_semantics<parallel>, #tpu.dimension_semantics<arbitrary>], iteration_bounds = array<i64: 1, 1>, scalar_prefetch = 0 : i64, scratch_operands = 1 : i64, tpu.core_type = #tpu.core_type<tc>, window_params = [{transform_indices = @transform_0, window_bounds = array<i64: 16, 256>}, {transform_indices = @transform_1, window_bounds = array<i64: 256, 128>}, {transform_indices = @transform_2, window_bounds = array<i64: 1, 128>}, {transform_indices = @transform_3, window_bounds = array<i64: 16, 128>}, {transform_indices = @transform_4, window_bounds = array<i64: 4, 128>}]} {
    %c0_i32 = arith.constant 0 : i32
    %0 = arith.cmpi eq, %arg1, %c0_i32 : i32
    %1 = arith.extui %0 : i1 to i32
    %c0_i32_0 = arith.constant 0 : i32
    %2 = arith.cmpi ne, %1, %c0_i32_0 : i32
    scf.if %2 {
      %cst_12 = arith.constant 0.000000e+00 : f32
      %19 = vector.broadcast %cst_12 : f32 to vector<16x128xf32>
      %c0_13 = arith.constant 0 : index
      %c0_14 = arith.constant 0 : index
      %20 = vector.load %arg7[%c0_13, %c0_14] : memref<16x128xf32, #tpu.memory_space<vmem>>, vector<16x128xf32>
      tpu.vector_store %arg7[%c0_13, %c0_14], %19 {strides = array<i32>} : memref<16x128xf32, #tpu.memory_space<vmem>>, vector<16x128xf32>,
    } else {
    }
    %c0 = arith.constant 0 : index
    %c0_1 = arith.constant 0 : index
    %3 = vector.load %arg2[%c0, %c0_1] : memref<16x256xbf16, #tpu.memory_space<vmem>>, vector<16x256xbf16>
    %4 = arith.extf %3 : vector<16x256xbf16> to vector<16x256xf32>
    %cst = arith.constant 0.000000e+00 : f32
    %5 = vector.broadcast %cst : f32 to vector<16x256xf32>
    %6 = arith.cmpf ogt, %4, %5 : vector<16x256xf32>
    %cst_2 = arith.constant 2.000000e-01 : f32
    %7 = vector.broadcast %cst_2 : f32 to vector<16x256xf32>
    %8 = arith.mulf %4, %7 : vector<16x256xf32>
    %9 = arith.select %6, %4, %8 : vector<16x256xi1>, vector<16x256xf32>
    %c0_3 = arith.constant 0 : index
    %c0_4 = arith.constant 0 : index
    %10 = vector.load %arg7[%c0_3, %c0_4] : memref<16x128xf32, #tpu.memory_space<vmem>>, vector<16x128xf32>
    %11 = arith.truncf %9 : vector<16x256xf32> to vector<16x256xbf16>
    %c0_5 = arith.constant 0 : index
    %c0_6 = arith.constant 0 : index
    %12 = vector.load %arg3[%c0_5, %c0_6] : memref<256x128xbf16, #tpu.memory_space<vmem>>, vector<256x128xbf16>
    %cst_7 = arith.constant dense<0.000000e+00> : vector<16x128xf32>
    %13 = tpu.matmul %11, %12, %cst_7 {dimension_numbers = #tpu.dot_dimension_numbers<[1], [0], [0], [1], [0, 0, 1, 1], [], []>} : vector<16x256xbf16>, vector<256x128xbf16>, vector<16x128xf32> -> vector<16x128xf32>
    %14 = arith.addf %10, %13 : vector<16x128xf32>
    %c0_8 = arith.constant 0 : index
    %c0_9 = arith.constant 0 : index
    %15 = vector.load %arg7[%c0_8, %c0_9] : memref<16x128xf32, #tpu.memory_space<vmem>>, vector<16x128xf32>
    tpu.vector_store %arg7[%c0_8, %c0_9], %14 {strides = array<i32>} : memref<16x128xf32, #tpu.memory_space<vmem>>, vector<16x128xf32>,
    %c0_i32_10 = arith.constant 0 : i32
    %16 = arith.cmpi eq, %arg1, %c0_i32_10 : i32
    %17 = arith.extui %16 : i1 to i32
    %c0_i32_11 = arith.constant 0 : i32
    %18 = arith.cmpi ne, %17, %c0_i32_11 : i32
    scf.if %18 {
      %c0_12 = arith.constant 0 : index
      %c0_13 = arith.constant 0 : index
      %19 = vector.load %arg7[%c0_12, %c0_13] : memref<16x128xf32, #tpu.memory_space<vmem>>, vector<16x128xf32>
      %c0_14 = arith.constant 0 : index
      %c0_15 = arith.constant 0 : index
      %20 = vector.load %arg4[%c0_14, %c0_15] : memref<1x128xf32, #tpu.memory_space<vmem>>, vector<1x128xf32>
      %21 = vector.broadcast %20 : vector<1x128xf32> to vector<16x128xf32>
      %22 = arith.addf %19, %21 : vector<16x128xf32>
      %23 = arith.truncf %22 : vector<16x128xf32> to vector<16x128xbf16>
      %c0_16 = arith.constant 0 : index
      %c0_17 = arith.constant 0 : index
      %24 = vector.load %arg5[%c0_16, %c0_17] : memref<16x128xbf16, #tpu.memory_space<vmem>>, vector<16x128xbf16>
      tpu.vector_store %arg5[%c0_16, %c0_17], %23 {strides = array<i32>} : memref<16x128xbf16, #tpu.memory_space<vmem>>, vector<16x128xbf16>,
      %25 = arith.extf %23 : vector<16x128xbf16> to vector<16x128xf32>
      %26 = tpu.iota {dimensions = array<i32: 0>} : vector<16x128xi32>
      %c8_i32 = arith.constant 8 : i32
      %27 = vector.broadcast %c8_i32 : i32 to vector<16x128xi32>
      %28 = arith.cmpi slt, %26, %27 : vector<16x128xi32>
      %cst_18 = arith.constant 0.000000e+00 : f32
      %29 = vector.broadcast %cst_18 : f32 to vector<16x128xf32>
      %30 = arith.select %28, %25, %29 : vector<16x128xi1>, vector<16x128xf32>
      %cst_19 = arith.constant dense<0.000000e+00> : vector<128xf32>
      %31 = vector.multi_reduction <add>, %30, %cst_19 [0] : vector<16x128xf32> to vector<128xf32>
      %32 = vector.shape_cast %31 : vector<128xf32> to vector<1x128xf32>
      %33 = arith.mulf %30, %30 : vector<16x128xf32>
      %cst_20 = arith.constant dense<0.000000e+00> : vector<128xf32>
      %34 = vector.multi_reduction <add>, %33, %cst_20 [0] : vector<16x128xf32> to vector<128xf32>
      %35 = vector.shape_cast %34 : vector<128xf32> to vector<1x128xf32>
      %c8_i32_21 = arith.constant 8 : i32
      %36 = vector.broadcast %c8_i32_21 : i32 to vector<16x128xi32>
      %37 = arith.cmpi sge, %26, %36 : vector<16x128xi32>
      %cst_22 = arith.constant 0.000000e+00 : f32
      %38 = vector.broadcast %cst_22 : f32 to vector<16x128xf32>
      %39 = arith.select %37, %25, %38 : vector<16x128xi1>, vector<16x128xf32>
      %cst_23 = arith.constant dense<0.000000e+00> : vector<128xf32>
      %40 = vector.multi_reduction <add>, %39, %cst_23 [0] : vector<16x128xf32> to vector<128xf32>
      %41 = vector.shape_cast %40 : vector<128xf32> to vector<1x128xf32>
      %42 = arith.mulf %39, %39 : vector<16x128xf32>
      %cst_24 = arith.constant dense<0.000000e+00> : vector<128xf32>
      %43 = vector.multi_reduction <add>, %42, %cst_24 [0] : vector<16x128xf32> to vector<128xf32>
      %44 = vector.shape_cast %43 : vector<128xf32> to vector<1x128xf32>
      %45 = tpu.concatenate %32, %35, %41, %44 in 0 : vector<1x128xf32>, vector<1x128xf32>, vector<1x128xf32>, vector<1x128xf32> -> vector<4x128xf32>
      %c0_25 = arith.constant 0 : index
      %c0_26 = arith.constant 0 : index
      %46 = vector.load %arg6[%c0_25, %c0_26] : memref<4x128xf32, #tpu.memory_space<vmem>>, vector<4x128xf32>
      tpu.vector_store %arg6[%c0_25, %c0_26], %45 {strides = array<i32>} : memref<4x128xf32, #tpu.memory_space<vmem>>, vector<4x128xf32>,
    } else {
    }
    return
  }
  func.func @transform_0(%arg0: i32, %arg1: i32) -> (i32, i32) {
    %c0_i32 = arith.constant 0 : i32
    %c0_i32_0 = arith.constant 0 : i32
    return %c0_i32, %arg1 : i32, i32
  }
  func.func @transform_1(%arg0: i32, %arg1: i32) -> (i32, i32) {
    %c0_i32 = arith.constant 0 : i32
    return %arg1, %arg0 : i32, i32
  }
  func.func @transform_2(%arg0: i32, %arg1: i32) -> (i32, i32) {
    %c0_i32 = arith.constant 0 : i32
    %c0_i32_0 = arith.constant 0 : i32
    return %c0_i32, %arg0 : i32, i32
  }
  func.func @transform_3(%arg0: i32, %arg1: i32) -> (i32, i32) {
    %c0_i32 = arith.constant 0 : i32
    %c0_i32_0 = arith.constant 0 : i32
    return %c0_i32, %arg0 : i32, i32
  }
  func.func @transform_4(%arg0: i32, %arg1: i32) -> (i32, i32) {
    %c0_i32 = arith.constant 0 : i32
    %c0_i32_0 = arith.constant 0 : i32
    return %c0_i32, %arg0 : i32, i32
  }
}

module attributes {stable_mosaic.version = 11 : i64} {
  func.func @_conv_matmul_kernel(%arg0: i32, %arg1: i32, %arg2: memref<16x512xbf16, #tpu.memory_space<vmem>>, %arg3: memref<2x512xf32, #tpu.memory_space<vmem>>, %arg4: memref<2x512xf32, #tpu.memory_space<vmem>>, %arg5: memref<512x128xbf16, #tpu.memory_space<vmem>>, %arg6: memref<1x128xf32, #tpu.memory_space<vmem>>, %arg7: memref<16x128xf32, #tpu.memory_space<vmem>>, %arg8: memref<16x128xf32, #tpu.memory_space<vmem>>) attributes {dimension_semantics = [#tpu.dimension_semantics<parallel>, #tpu.dimension_semantics<arbitrary>], iteration_bounds = array<i64: 1, 1>, scalar_prefetch = 0 : i64, scratch_operands = 1 : i64, tpu.core_type = #tpu.core_type<tc>, window_params = [{transform_indices = @transform_0, window_bounds = array<i64: 16, 512>}, {transform_indices = @transform_1, window_bounds = array<i64: 2, 512>}, {transform_indices = @transform_2, window_bounds = array<i64: 2, 512>}, {transform_indices = @transform_3, window_bounds = array<i64: 512, 128>}, {transform_indices = @transform_4, window_bounds = array<i64: 1, 128>}, {transform_indices = @transform_5, window_bounds = array<i64: 16, 128>}]} {
    %c0_i32 = arith.constant 0 : i32
    %0 = arith.cmpi eq, %arg1, %c0_i32 : i32
    %1 = arith.extui %0 : i1 to i32
    %c0_i32_0 = arith.constant 0 : i32
    %2 = arith.cmpi ne, %1, %c0_i32_0 : i32
    scf.if %2 {
      %cst_19 = arith.constant 0.000000e+00 : f32
      %38 = vector.broadcast %cst_19 : f32 to vector<16x128xf32>
      %c0_20 = arith.constant 0 : index
      %c0_21 = arith.constant 0 : index
      %39 = vector.load %arg8[%c0_20, %c0_21] : memref<16x128xf32, #tpu.memory_space<vmem>>, vector<16x128xf32>
      tpu.vector_store %arg8[%c0_20, %c0_21], %38 {strides = array<i32>} : memref<16x128xf32, #tpu.memory_space<vmem>>, vector<16x128xf32>,
    } else {
    }
    %c0 = arith.constant 0 : index
    %c0_1 = arith.constant 0 : index
    %3 = vector.load %arg2[%c0, %c0_1] : memref<16x512xbf16, #tpu.memory_space<vmem>>, vector<16x512xbf16>
    %4 = arith.extf %3 : vector<16x512xbf16> to vector<16x512xf32>
    %5 = tpu.iota {dimensions = array<i32: 0>} : vector<16x512xi32>
    %c1 = arith.constant 1 : index
    %c0_2 = arith.constant 0 : index
    %6 = vector.load %arg3[%c1, %c0_2] : memref<2x512xf32, #tpu.memory_space<vmem>>, vector<1x512xf32>
    %7 = vector.shape_cast %6 : vector<1x512xf32> to vector<1x512xf32>
    %8 = vector.broadcast %7 : vector<1x512xf32> to vector<16x512xf32>
    %c1_3 = arith.constant 1 : index
    %c0_4 = arith.constant 0 : index
    %9 = vector.load %arg4[%c1_3, %c0_4] : memref<2x512xf32, #tpu.memory_space<vmem>>, vector<1x512xf32>
    %10 = vector.shape_cast %9 : vector<1x512xf32> to vector<1x512xf32>
    %11 = vector.broadcast %10 : vector<1x512xf32> to vector<16x512xf32>
    %c2_i32 = arith.constant 2 : i32
    %12 = vector.broadcast %c2_i32 : i32 to vector<16x512xi32>
    %13 = arith.cmpi slt, %5, %12 : vector<16x512xi32>
    %c0_5 = arith.constant 0 : index
    %c0_6 = arith.constant 0 : index
    %14 = vector.load %arg3[%c0_5, %c0_6] : memref<2x512xf32, #tpu.memory_space<vmem>>, vector<1x512xf32>
    %15 = vector.shape_cast %14 : vector<1x512xf32> to vector<1x512xf32>
    %16 = vector.broadcast %15 : vector<1x512xf32> to vector<16x512xf32>
    %17 = arith.select %13, %16, %8 : vector<16x512xi1>, vector<16x512xf32>
    %c0_7 = arith.constant 0 : index
    %c0_8 = arith.constant 0 : index
    %18 = vector.load %arg4[%c0_7, %c0_8] : memref<2x512xf32, #tpu.memory_space<vmem>>, vector<1x512xf32>
    %19 = vector.shape_cast %18 : vector<1x512xf32> to vector<1x512xf32>
    %20 = vector.broadcast %19 : vector<1x512xf32> to vector<16x512xf32>
    %21 = arith.select %13, %20, %11 : vector<16x512xi1>, vector<16x512xf32>
    %22 = arith.mulf %4, %17 : vector<16x512xf32>
    %23 = arith.addf %22, %21 : vector<16x512xf32>
    %cst = arith.constant 0.000000e+00 : f32
    %24 = vector.broadcast %cst : f32 to vector<16x512xf32>
    %25 = arith.cmpf ogt, %23, %24 : vector<16x512xf32>
    %cst_9 = arith.constant 2.000000e-01 : f32
    %26 = vector.broadcast %cst_9 : f32 to vector<16x512xf32>
    %27 = arith.mulf %23, %26 : vector<16x512xf32>
    %28 = arith.select %25, %23, %27 : vector<16x512xi1>, vector<16x512xf32>
    %c0_10 = arith.constant 0 : index
    %c0_11 = arith.constant 0 : index
    %29 = vector.load %arg8[%c0_10, %c0_11] : memref<16x128xf32, #tpu.memory_space<vmem>>, vector<16x128xf32>
    %30 = arith.truncf %28 : vector<16x512xf32> to vector<16x512xbf16>
    %c0_12 = arith.constant 0 : index
    %c0_13 = arith.constant 0 : index
    %31 = vector.load %arg5[%c0_12, %c0_13] : memref<512x128xbf16, #tpu.memory_space<vmem>>, vector<512x128xbf16>
    %cst_14 = arith.constant dense<0.000000e+00> : vector<16x128xf32>
    %32 = tpu.matmul %30, %31, %cst_14 {dimension_numbers = #tpu.dot_dimension_numbers<[1], [0], [0], [1], [0, 0, 1, 1], [], []>} : vector<16x512xbf16>, vector<512x128xbf16>, vector<16x128xf32> -> vector<16x128xf32>
    %33 = arith.addf %29, %32 : vector<16x128xf32>
    %c0_15 = arith.constant 0 : index
    %c0_16 = arith.constant 0 : index
    %34 = vector.load %arg8[%c0_15, %c0_16] : memref<16x128xf32, #tpu.memory_space<vmem>>, vector<16x128xf32>
    tpu.vector_store %arg8[%c0_15, %c0_16], %33 {strides = array<i32>} : memref<16x128xf32, #tpu.memory_space<vmem>>, vector<16x128xf32>,
    %c0_i32_17 = arith.constant 0 : i32
    %35 = arith.cmpi eq, %arg1, %c0_i32_17 : i32
    %36 = arith.extui %35 : i1 to i32
    %c0_i32_18 = arith.constant 0 : i32
    %37 = arith.cmpi ne, %36, %c0_i32_18 : i32
    scf.if %37 {
      %c0_19 = arith.constant 0 : index
      %c0_20 = arith.constant 0 : index
      %38 = vector.load %arg8[%c0_19, %c0_20] : memref<16x128xf32, #tpu.memory_space<vmem>>, vector<16x128xf32>
      %c0_21 = arith.constant 0 : index
      %c0_22 = arith.constant 0 : index
      %39 = vector.load %arg6[%c0_21, %c0_22] : memref<1x128xf32, #tpu.memory_space<vmem>>, vector<1x128xf32>
      %40 = vector.broadcast %39 : vector<1x128xf32> to vector<16x128xf32>
      %41 = arith.addf %38, %40 : vector<16x128xf32>
      %c0_23 = arith.constant 0 : index
      %c0_24 = arith.constant 0 : index
      %42 = vector.load %arg7[%c0_23, %c0_24] : memref<16x128xf32, #tpu.memory_space<vmem>>, vector<16x128xf32>
      tpu.vector_store %arg7[%c0_23, %c0_24], %41 {strides = array<i32>} : memref<16x128xf32, #tpu.memory_space<vmem>>, vector<16x128xf32>,
    } else {
    }
    return
  }
  func.func @transform_0(%arg0: i32, %arg1: i32) -> (i32, i32) {
    %c0_i32 = arith.constant 0 : i32
    %c0_i32_0 = arith.constant 0 : i32
    return %c0_i32, %arg1 : i32, i32
  }
  func.func @transform_1(%arg0: i32, %arg1: i32) -> (i32, i32) {
    %c0_i32 = arith.constant 0 : i32
    %c0_i32_0 = arith.constant 0 : i32
    return %c0_i32, %arg1 : i32, i32
  }
  func.func @transform_2(%arg0: i32, %arg1: i32) -> (i32, i32) {
    %c0_i32 = arith.constant 0 : i32
    %c0_i32_0 = arith.constant 0 : i32
    return %c0_i32, %arg1 : i32, i32
  }
  func.func @transform_3(%arg0: i32, %arg1: i32) -> (i32, i32) {
    %c0_i32 = arith.constant 0 : i32
    return %arg1, %arg0 : i32, i32
  }
  func.func @transform_4(%arg0: i32, %arg1: i32) -> (i32, i32) {
    %c0_i32 = arith.constant 0 : i32
    %c0_i32_0 = arith.constant 0 : i32
    return %c0_i32, %arg0 : i32, i32
  }
  func.func @transform_5(%arg0: i32, %arg1: i32) -> (i32, i32) {
    %c0_i32 = arith.constant 0 : i32
    %c0_i32_0 = arith.constant 0 : i32
    return %c0_i32, %arg0 : i32, i32
  }
}

module attributes {stable_mosaic.version = 11 : i64} {
  func.func @_conv_matmul_kernel(%arg0: i32, %arg1: i32, %arg2: memref<16x128xbf16, #tpu.memory_space<vmem>>, %arg3: memref<128x128xbf16, #tpu.memory_space<vmem>>, %arg4: memref<1x128xf32, #tpu.memory_space<vmem>>, %arg5: memref<16x128xbf16, #tpu.memory_space<vmem>>, %arg6: memref<16x128xf32, #tpu.memory_space<vmem>>) attributes {dimension_semantics = [#tpu.dimension_semantics<parallel>, #tpu.dimension_semantics<arbitrary>], iteration_bounds = array<i64: 1, 1>, scalar_prefetch = 0 : i64, scratch_operands = 1 : i64, tpu.core_type = #tpu.core_type<tc>, window_params = [{transform_indices = @transform_0, window_bounds = array<i64: 16, 128>}, {transform_indices = @transform_1, window_bounds = array<i64: 128, 128>}, {transform_indices = @transform_2, window_bounds = array<i64: 1, 128>}, {transform_indices = @transform_3, window_bounds = array<i64: 16, 128>}]} {
    %c0_i32 = arith.constant 0 : i32
    %0 = arith.cmpi eq, %arg1, %c0_i32 : i32
    %1 = arith.extui %0 : i1 to i32
    %c0_i32_0 = arith.constant 0 : i32
    %2 = arith.cmpi ne, %1, %c0_i32_0 : i32
    scf.if %2 {
      %cst_11 = arith.constant 0.000000e+00 : f32
      %16 = vector.broadcast %cst_11 : f32 to vector<16x128xf32>
      %c0_12 = arith.constant 0 : index
      %c0_13 = arith.constant 0 : index
      %17 = vector.load %arg6[%c0_12, %c0_13] : memref<16x128xf32, #tpu.memory_space<vmem>>, vector<16x128xf32>
      tpu.vector_store %arg6[%c0_12, %c0_13], %16 {strides = array<i32>} : memref<16x128xf32, #tpu.memory_space<vmem>>, vector<16x128xf32>,
    } else {
    }
    %c0 = arith.constant 0 : index
    %c0_1 = arith.constant 0 : index
    %3 = vector.load %arg2[%c0, %c0_1] : memref<16x128xbf16, #tpu.memory_space<vmem>>, vector<16x128xbf16>
    %4 = arith.extf %3 : vector<16x128xbf16> to vector<16x128xf32>
    %cst = arith.constant 0.000000e+00 : f32
    %5 = vector.broadcast %cst : f32 to vector<16x128xf32>
    %6 = arith.maximumf %4, %5 : vector<16x128xf32>
    %c0_2 = arith.constant 0 : index
    %c0_3 = arith.constant 0 : index
    %7 = vector.load %arg6[%c0_2, %c0_3] : memref<16x128xf32, #tpu.memory_space<vmem>>, vector<16x128xf32>
    %8 = arith.truncf %6 : vector<16x128xf32> to vector<16x128xbf16>
    %c0_4 = arith.constant 0 : index
    %c0_5 = arith.constant 0 : index
    %9 = vector.load %arg3[%c0_4, %c0_5] : memref<128x128xbf16, #tpu.memory_space<vmem>>, vector<128x128xbf16>
    %cst_6 = arith.constant dense<0.000000e+00> : vector<16x128xf32>
    %10 = tpu.matmul %8, %9, %cst_6 {dimension_numbers = #tpu.dot_dimension_numbers<[1], [0], [0], [1], [0, 0, 1, 1], [], []>} : vector<16x128xbf16>, vector<128x128xbf16>, vector<16x128xf32> -> vector<16x128xf32>
    %11 = arith.addf %7, %10 : vector<16x128xf32>
    %c0_7 = arith.constant 0 : index
    %c0_8 = arith.constant 0 : index
    %12 = vector.load %arg6[%c0_7, %c0_8] : memref<16x128xf32, #tpu.memory_space<vmem>>, vector<16x128xf32>
    tpu.vector_store %arg6[%c0_7, %c0_8], %11 {strides = array<i32>} : memref<16x128xf32, #tpu.memory_space<vmem>>, vector<16x128xf32>,
    %c0_i32_9 = arith.constant 0 : i32
    %13 = arith.cmpi eq, %arg1, %c0_i32_9 : i32
    %14 = arith.extui %13 : i1 to i32
    %c0_i32_10 = arith.constant 0 : i32
    %15 = arith.cmpi ne, %14, %c0_i32_10 : i32
    scf.if %15 {
      %c0_11 = arith.constant 0 : index
      %c0_12 = arith.constant 0 : index
      %16 = vector.load %arg6[%c0_11, %c0_12] : memref<16x128xf32, #tpu.memory_space<vmem>>, vector<16x128xf32>
      %c0_13 = arith.constant 0 : index
      %c0_14 = arith.constant 0 : index
      %17 = vector.load %arg4[%c0_13, %c0_14] : memref<1x128xf32, #tpu.memory_space<vmem>>, vector<1x128xf32>
      %18 = vector.broadcast %17 : vector<1x128xf32> to vector<16x128xf32>
      %19 = arith.addf %16, %18 : vector<16x128xf32>
      %20 = arith.truncf %19 : vector<16x128xf32> to vector<16x128xbf16>
      %c0_15 = arith.constant 0 : index
      %c0_16 = arith.constant 0 : index
      %21 = vector.load %arg5[%c0_15, %c0_16] : memref<16x128xbf16, #tpu.memory_space<vmem>>, vector<16x128xbf16>
      tpu.vector_store %arg5[%c0_15, %c0_16], %20 {strides = array<i32>} : memref<16x128xbf16, #tpu.memory_space<vmem>>, vector<16x128xbf16>,
    } else {
    }
    return
  }
  func.func @transform_0(%arg0: i32, %arg1: i32) -> (i32, i32) {
    %c0_i32 = arith.constant 0 : i32
    %c0_i32_0 = arith.constant 0 : i32
    return %c0_i32, %arg1 : i32, i32
  }
  func.func @transform_1(%arg0: i32, %arg1: i32) -> (i32, i32) {
    %c0_i32 = arith.constant 0 : i32
    return %arg1, %arg0 : i32, i32
  }
  func.func @transform_2(%arg0: i32, %arg1: i32) -> (i32, i32) {
    %c0_i32 = arith.constant 0 : i32
    %c0_i32_0 = arith.constant 0 : i32
    return %c0_i32, %arg0 : i32, i32
  }
  func.func @transform_3(%arg0: i32, %arg1: i32) -> (i32, i32) {
    %c0_i32 = arith.constant 0 : i32
    %c0_i32_0 = arith.constant 0 : i32
    return %c0_i32, %arg0 : i32, i32
  }
}

module attributes {stable_mosaic.version = 11 : i64} {
  func.func @_conv_matmul_kernel(%arg0: i32, %arg1: i32, %arg2: memref<32x256xbf16, #tpu.memory_space<vmem>>, %arg3: memref<1x256xf32, #tpu.memory_space<vmem>>, %arg4: memref<1x256xf32, #tpu.memory_space<vmem>>, %arg5: memref<256x128xbf16, #tpu.memory_space<vmem>>, %arg6: memref<1x128xf32, #tpu.memory_space<vmem>>, %arg7: memref<32x128xbf16, #tpu.memory_space<vmem>>, %arg8: memref<32x128xf32, #tpu.memory_space<vmem>>) attributes {dimension_semantics = [#tpu.dimension_semantics<parallel>, #tpu.dimension_semantics<arbitrary>], iteration_bounds = array<i64: 1, 1>, scalar_prefetch = 0 : i64, scratch_operands = 1 : i64, tpu.core_type = #tpu.core_type<tc>, window_params = [{transform_indices = @transform_0, window_bounds = array<i64: 32, 256>}, {transform_indices = @transform_1, window_bounds = array<i64: 1, 256>}, {transform_indices = @transform_2, window_bounds = array<i64: 1, 256>}, {transform_indices = @transform_3, window_bounds = array<i64: 256, 128>}, {transform_indices = @transform_4, window_bounds = array<i64: 1, 128>}, {transform_indices = @transform_5, window_bounds = array<i64: 32, 128>}]} {
    %c0_i32 = arith.constant 0 : i32
    %0 = arith.cmpi eq, %arg1, %c0_i32 : i32
    %1 = arith.extui %0 : i1 to i32
    %c0_i32_0 = arith.constant 0 : i32
    %2 = arith.cmpi ne, %1, %c0_i32_0 : i32
    scf.if %2 {
      %cst_15 = arith.constant 0.000000e+00 : f32
      %22 = vector.broadcast %cst_15 : f32 to vector<32x128xf32>
      %c0_16 = arith.constant 0 : index
      %c0_17 = arith.constant 0 : index
      %23 = vector.load %arg8[%c0_16, %c0_17] : memref<32x128xf32, #tpu.memory_space<vmem>>, vector<32x128xf32>
      tpu.vector_store %arg8[%c0_16, %c0_17], %22 {strides = array<i32>} : memref<32x128xf32, #tpu.memory_space<vmem>>, vector<32x128xf32>,
    } else {
    }
    %c0 = arith.constant 0 : index
    %c0_1 = arith.constant 0 : index
    %3 = vector.load %arg2[%c0, %c0_1] : memref<32x256xbf16, #tpu.memory_space<vmem>>, vector<32x256xbf16>
    %4 = arith.extf %3 : vector<32x256xbf16> to vector<32x256xf32>
    %c0_2 = arith.constant 0 : index
    %c0_3 = arith.constant 0 : index
    %5 = vector.load %arg3[%c0_2, %c0_3] : memref<1x256xf32, #tpu.memory_space<vmem>>, vector<1x256xf32>
    %c0_4 = arith.constant 0 : index
    %c0_5 = arith.constant 0 : index
    %6 = vector.load %arg4[%c0_4, %c0_5] : memref<1x256xf32, #tpu.memory_space<vmem>>, vector<1x256xf32>
    %7 = vector.broadcast %5 : vector<1x256xf32> to vector<32x256xf32>
    %8 = arith.mulf %4, %7 : vector<32x256xf32>
    %9 = vector.broadcast %6 : vector<1x256xf32> to vector<32x256xf32>
    %10 = arith.addf %8, %9 : vector<32x256xf32>
    %cst = arith.constant 0.000000e+00 : f32
    %11 = vector.broadcast %cst : f32 to vector<32x256xf32>
    %12 = arith.maximumf %10, %11 : vector<32x256xf32>
    %c0_6 = arith.constant 0 : index
    %c0_7 = arith.constant 0 : index
    %13 = vector.load %arg8[%c0_6, %c0_7] : memref<32x128xf32, #tpu.memory_space<vmem>>, vector<32x128xf32>
    %14 = arith.truncf %12 : vector<32x256xf32> to vector<32x256xbf16>
    %c0_8 = arith.constant 0 : index
    %c0_9 = arith.constant 0 : index
    %15 = vector.load %arg5[%c0_8, %c0_9] : memref<256x128xbf16, #tpu.memory_space<vmem>>, vector<256x128xbf16>
    %cst_10 = arith.constant dense<0.000000e+00> : vector<32x128xf32>
    %16 = tpu.matmul %14, %15, %cst_10 {dimension_numbers = #tpu.dot_dimension_numbers<[1], [0], [0], [1], [0, 0, 1, 1], [], []>} : vector<32x256xbf16>, vector<256x128xbf16>, vector<32x128xf32> -> vector<32x128xf32>
    %17 = arith.addf %13, %16 : vector<32x128xf32>
    %c0_11 = arith.constant 0 : index
    %c0_12 = arith.constant 0 : index
    %18 = vector.load %arg8[%c0_11, %c0_12] : memref<32x128xf32, #tpu.memory_space<vmem>>, vector<32x128xf32>
    tpu.vector_store %arg8[%c0_11, %c0_12], %17 {strides = array<i32>} : memref<32x128xf32, #tpu.memory_space<vmem>>, vector<32x128xf32>,
    %c0_i32_13 = arith.constant 0 : i32
    %19 = arith.cmpi eq, %arg1, %c0_i32_13 : i32
    %20 = arith.extui %19 : i1 to i32
    %c0_i32_14 = arith.constant 0 : i32
    %21 = arith.cmpi ne, %20, %c0_i32_14 : i32
    scf.if %21 {
      %c0_15 = arith.constant 0 : index
      %c0_16 = arith.constant 0 : index
      %22 = vector.load %arg8[%c0_15, %c0_16] : memref<32x128xf32, #tpu.memory_space<vmem>>, vector<32x128xf32>
      %c0_17 = arith.constant 0 : index
      %c0_18 = arith.constant 0 : index
      %23 = vector.load %arg6[%c0_17, %c0_18] : memref<1x128xf32, #tpu.memory_space<vmem>>, vector<1x128xf32>
      %24 = vector.broadcast %23 : vector<1x128xf32> to vector<32x128xf32>
      %25 = arith.addf %22, %24 : vector<32x128xf32>
      %26 = arith.truncf %25 : vector<32x128xf32> to vector<32x128xbf16>
      %c0_19 = arith.constant 0 : index
      %c0_20 = arith.constant 0 : index
      %27 = vector.load %arg7[%c0_19, %c0_20] : memref<32x128xbf16, #tpu.memory_space<vmem>>, vector<32x128xbf16>
      tpu.vector_store %arg7[%c0_19, %c0_20], %26 {strides = array<i32>} : memref<32x128xbf16, #tpu.memory_space<vmem>>, vector<32x128xbf16>,
    } else {
    }
    return
  }
  func.func @transform_0(%arg0: i32, %arg1: i32) -> (i32, i32) {
    %c0_i32 = arith.constant 0 : i32
    %c0_i32_0 = arith.constant 0 : i32
    return %c0_i32, %arg1 : i32, i32
  }
  func.func @transform_1(%arg0: i32, %arg1: i32) -> (i32, i32) {
    %c0_i32 = arith.constant 0 : i32
    %c0_i32_0 = arith.constant 0 : i32
    return %c0_i32, %arg1 : i32, i32
  }
  func.func @transform_2(%arg0: i32, %arg1: i32) -> (i32, i32) {
    %c0_i32 = arith.constant 0 : i32
    %c0_i32_0 = arith.constant 0 : i32
    return %c0_i32, %arg1 : i32, i32
  }
  func.func @transform_3(%arg0: i32, %arg1: i32) -> (i32, i32) {
    %c0_i32 = arith.constant 0 : i32
    return %arg1, %arg0 : i32, i32
  }
  func.func @transform_4(%arg0: i32, %arg1: i32) -> (i32, i32) {
    %c0_i32 = arith.constant 0 : i32
    %c0_i32_0 = arith.constant 0 : i32
    return %c0_i32, %arg0 : i32, i32
  }
  func.func @transform_5(%arg0: i32, %arg1: i32) -> (i32, i32) {
    %c0_i32 = arith.constant 0 : i32
    %c0_i32_0 = arith.constant 0 : i32
    return %c0_i32, %arg0 : i32, i32
  }
}

module attributes {stable_mosaic.version = 11 : i64} {
  func.func @_conv_matmul_kernel(%arg0: i32, %arg1: i32, %arg2: memref<64x128xbf16, #tpu.memory_space<vmem>>, %arg3: memref<1x128xf32, #tpu.memory_space<vmem>>, %arg4: memref<1x128xf32, #tpu.memory_space<vmem>>, %arg5: memref<128x128xbf16, #tpu.memory_space<vmem>>, %arg6: memref<1x128xf32, #tpu.memory_space<vmem>>, %arg7: memref<64x128xf32, #tpu.memory_space<vmem>>, %arg8: memref<64x128xf32, #tpu.memory_space<vmem>>) attributes {dimension_semantics = [#tpu.dimension_semantics<parallel>, #tpu.dimension_semantics<arbitrary>], iteration_bounds = array<i64: 1, 1>, scalar_prefetch = 0 : i64, scratch_operands = 1 : i64, tpu.core_type = #tpu.core_type<tc>, window_params = [{transform_indices = @transform_0, window_bounds = array<i64: 64, 128>}, {transform_indices = @transform_1, window_bounds = array<i64: 1, 128>}, {transform_indices = @transform_2, window_bounds = array<i64: 1, 128>}, {transform_indices = @transform_3, window_bounds = array<i64: 128, 128>}, {transform_indices = @transform_4, window_bounds = array<i64: 1, 128>}, {transform_indices = @transform_5, window_bounds = array<i64: 64, 128>}]} {
    %c0_i32 = arith.constant 0 : i32
    %0 = arith.cmpi eq, %arg1, %c0_i32 : i32
    %1 = arith.extui %0 : i1 to i32
    %c0_i32_0 = arith.constant 0 : i32
    %2 = arith.cmpi ne, %1, %c0_i32_0 : i32
    scf.if %2 {
      %cst_15 = arith.constant 0.000000e+00 : f32
      %22 = vector.broadcast %cst_15 : f32 to vector<64x128xf32>
      %c0_16 = arith.constant 0 : index
      %c0_17 = arith.constant 0 : index
      %23 = vector.load %arg8[%c0_16, %c0_17] : memref<64x128xf32, #tpu.memory_space<vmem>>, vector<64x128xf32>
      tpu.vector_store %arg8[%c0_16, %c0_17], %22 {strides = array<i32>} : memref<64x128xf32, #tpu.memory_space<vmem>>, vector<64x128xf32>,
    } else {
    }
    %c0 = arith.constant 0 : index
    %c0_1 = arith.constant 0 : index
    %3 = vector.load %arg2[%c0, %c0_1] : memref<64x128xbf16, #tpu.memory_space<vmem>>, vector<64x128xbf16>
    %4 = arith.extf %3 : vector<64x128xbf16> to vector<64x128xf32>
    %c0_2 = arith.constant 0 : index
    %c0_3 = arith.constant 0 : index
    %5 = vector.load %arg3[%c0_2, %c0_3] : memref<1x128xf32, #tpu.memory_space<vmem>>, vector<1x128xf32>
    %c0_4 = arith.constant 0 : index
    %c0_5 = arith.constant 0 : index
    %6 = vector.load %arg4[%c0_4, %c0_5] : memref<1x128xf32, #tpu.memory_space<vmem>>, vector<1x128xf32>
    %7 = vector.broadcast %5 : vector<1x128xf32> to vector<64x128xf32>
    %8 = arith.mulf %4, %7 : vector<64x128xf32>
    %9 = vector.broadcast %6 : vector<1x128xf32> to vector<64x128xf32>
    %10 = arith.addf %8, %9 : vector<64x128xf32>
    %cst = arith.constant 0.000000e+00 : f32
    %11 = vector.broadcast %cst : f32 to vector<64x128xf32>
    %12 = arith.maximumf %10, %11 : vector<64x128xf32>
    %c0_6 = arith.constant 0 : index
    %c0_7 = arith.constant 0 : index
    %13 = vector.load %arg8[%c0_6, %c0_7] : memref<64x128xf32, #tpu.memory_space<vmem>>, vector<64x128xf32>
    %14 = arith.truncf %12 : vector<64x128xf32> to vector<64x128xbf16>
    %c0_8 = arith.constant 0 : index
    %c0_9 = arith.constant 0 : index
    %15 = vector.load %arg5[%c0_8, %c0_9] : memref<128x128xbf16, #tpu.memory_space<vmem>>, vector<128x128xbf16>
    %cst_10 = arith.constant dense<0.000000e+00> : vector<64x128xf32>
    %16 = tpu.matmul %14, %15, %cst_10 {dimension_numbers = #tpu.dot_dimension_numbers<[1], [0], [0], [1], [0, 0, 1, 1], [], []>} : vector<64x128xbf16>, vector<128x128xbf16>, vector<64x128xf32> -> vector<64x128xf32>
    %17 = arith.addf %13, %16 : vector<64x128xf32>
    %c0_11 = arith.constant 0 : index
    %c0_12 = arith.constant 0 : index
    %18 = vector.load %arg8[%c0_11, %c0_12] : memref<64x128xf32, #tpu.memory_space<vmem>>, vector<64x128xf32>
    tpu.vector_store %arg8[%c0_11, %c0_12], %17 {strides = array<i32>} : memref<64x128xf32, #tpu.memory_space<vmem>>, vector<64x128xf32>,
    %c0_i32_13 = arith.constant 0 : i32
    %19 = arith.cmpi eq, %arg1, %c0_i32_13 : i32
    %20 = arith.extui %19 : i1 to i32
    %c0_i32_14 = arith.constant 0 : i32
    %21 = arith.cmpi ne, %20, %c0_i32_14 : i32
    scf.if %21 {
      %c0_15 = arith.constant 0 : index
      %c0_16 = arith.constant 0 : index
      %22 = vector.load %arg8[%c0_15, %c0_16] : memref<64x128xf32, #tpu.memory_space<vmem>>, vector<64x128xf32>
      %c0_17 = arith.constant 0 : index
      %c0_18 = arith.constant 0 : index
      %23 = vector.load %arg6[%c0_17, %c0_18] : memref<1x128xf32, #tpu.memory_space<vmem>>, vector<1x128xf32>
      %24 = vector.broadcast %23 : vector<1x128xf32> to vector<64x128xf32>
      %25 = arith.addf %22, %24 : vector<64x128xf32>
      %c0_19 = arith.constant 0 : index
      %c0_20 = arith.constant 0 : index
      %26 = vector.load %arg7[%c0_19, %c0_20] : memref<64x128xf32, #tpu.memory_space<vmem>>, vector<64x128xf32>
      tpu.vector_store %arg7[%c0_19, %c0_20], %25 {strides = array<i32>} : memref<64x128xf32, #tpu.memory_space<vmem>>, vector<64x128xf32>,
    } else {
    }
    return
  }
  func.func @transform_0(%arg0: i32, %arg1: i32) -> (i32, i32) {
    %c0_i32 = arith.constant 0 : i32
    %c0_i32_0 = arith.constant 0 : i32
    return %c0_i32, %arg1 : i32, i32
  }
  func.func @transform_1(%arg0: i32, %arg1: i32) -> (i32, i32) {
    %c0_i32 = arith.constant 0 : i32
    %c0_i32_0 = arith.constant 0 : i32
    return %c0_i32, %arg1 : i32, i32
  }
  func.func @transform_2(%arg0: i32, %arg1: i32) -> (i32, i32) {
    %c0_i32 = arith.constant 0 : i32
    %c0_i32_0 = arith.constant 0 : i32
    return %c0_i32, %arg1 : i32, i32
  }
  func.func @transform_3(%arg0: i32, %arg1: i32) -> (i32, i32) {
    %c0_i32 = arith.constant 0 : i32
    return %arg1, %arg0 : i32, i32
  }
  func.func @transform_4(%arg0: i32, %arg1: i32) -> (i32, i32) {
    %c0_i32 = arith.constant 0 : i32
    %c0_i32_0 = arith.constant 0 : i32
    return %c0_i32, %arg0 : i32, i32
  }
  func.func @transform_5(%arg0: i32, %arg1: i32) -> (i32, i32) {
    %c0_i32 = arith.constant 0 : i32
    %c0_i32_0 = arith.constant 0 : i32
    return %c0_i32, %arg0 : i32, i32
  }
}

</mosaic_0001>

<llo_original>
// kernel: unet_skip_block_output_forward.6
$region0: #{unet_skip_block_output_forward.6}
  #allocation0 [shape = 'u32[]', space=smem, size = 0x4, offset = 0x4, fixed_abs, tag = 'smem constant byte address 0x4 - core index']
  #allocation1 [shape = 'u32[72,128]{1,0:T(1,128)}', space=vmem, size = 0x9000, scoped, tag = 'internal scratch']
  #allocation2 [shape = 'f32[64,128]{1,0:T(8,128)}', space=vmem, size = 0x8000, scoped, tag = 'scratch operand']
  %s0 = inlined_call_operand.vmem [shape: bf16[64,128], index: 0, kind: input, shape index: {}]
  %s1 = inlined_call_operand.vmem [shape: bf16[128,128], index: 1, kind: input, shape index: {}]
  %s2 = inlined_call_operand.vmem [shape: f32[1,128], index: 2, kind: input, shape index: {}]
  %s3 = inlined_call_operand.vmem [shape: bf16[64,128], index: 3, kind: output, shape index: {}]
  %s4 = sld [smem:[#allocation0]]
  $region30: #{unet_skip_block_output_forward.6} parent=0
    _
  %s6 = ssub.s32 1, %s4
  %s7 = scalar_select 0, %s6, %s4
  // Predicated region
  $region2: #{unet_skip_block_output_forward.6} parent=0 // pred_check
    _
  $region3: #{unet_skip_block_output_forward.6} parent=0 // pred_check_branch
    %9 = sbr.rel (0) target = $region5
  $region4: #{unet_skip_block_output_forward.6} parent=0 // pred_region
    _
  $region5: #{unet_skip_block_output_forward.6} parent=0 // pred_fallthru
    _
  // Predicated region
  $region6: #{unet_skip_block_output_forward.6} parent=0 // pred_check
    _
  $region7: #{unet_skip_block_output_forward.6} parent=0 // pred_check_branch
    %11 = sbr.rel (0) target = $region9
  $region8: #{unet_skip_block_output_forward.6} parent=0 // pred_region
    _
  $region9: #{unet_skip_block_output_forward.6} parent=0 // pred_fallthru
    _
  // Predicated region
  $region10: #{unet_skip_block_output_forward.6} parent=0 // pred_check
    _
  $region11: #{unet_skip_block_output_forward.6} parent=0 // pred_check_branch
    %13 = sbr.rel (0) target = $region13
  $region12: #{unet_skip_block_output_forward.6} parent=0 // pred_region
    _
  $region13: #{unet_skip_block_output_forward.6} parent=0 // pred_fallthru
    _
  %p14 = scmp.eq.s32.totalorder 0, 0
  // Predicated region
  $region14: #{unet_skip_block_output_forward.6} parent=0 // pred_check
    %p15 = pneg %p14
  $region15: #{unet_skip_block_output_forward.6} parent=0 // pred_check_branch
    %17 = sbr.rel (%p15) target = $region17
  $region16: #{unet_skip_block_output_forward.6} parent=0 // pred_region
    %18 = vst [vmem:[#allocation2] sm:$0xff] 0.0
    %19 = vst [vmem:[#allocation2 + $0x8] sm:$0xff] 0.0
    %20 = vst [vmem:[#allocation2 + $0x10] sm:$0xff] 0.0
    %21 = vst [vmem:[#allocation2 + $0x18] sm:$0xff] 0.0
    %22 = vst [vmem:[#allocation2 + $0x20] sm:$0xff] 0.0
    %23 = vst [vmem:[#allocation2 + $0x28] sm:$0xff] 0.0
    %24 = vst [vmem:[#allocation2 + $0x30] sm:$0xff] 0.0
    %25 = vst [vmem:[#allocation2 + $0x38] sm:$0xff] 0.0
  $region17: #{unet_skip_block_output_forward.6} parent=0 // pred_fallthru
    _
  %v26 = vld [vmem:[%s0] sm:$0xf]
  %v27 = vld [vmem:[%s0 + $0x4] sm:$0xf]
  %v28 = vld [vmem:[%s0 + $0x8] sm:$0xf]
  %v29 = vld [vmem:[%s0 + $0xc] sm:$0xf]
  %v30 = vld [vmem:[%s0 + $0x10] sm:$0xf]
  %v31 = vld [vmem:[%s0 + $0x14] sm:$0xf]
  %v32 = vld [vmem:[%s0 + $0x18] sm:$0xf]
  %v33 = vld [vmem:[%s0 + $0x1c] sm:$0xf]
  %v34 = vld [vmem:[#allocation2] sm:$0xff]
  %v35 = vld [vmem:[#allocation2 + $0x8] sm:$0xff]
  %v36 = vld [vmem:[#allocation2 + $0x10] sm:$0xff]
  %v37 = vld [vmem:[#allocation2 + $0x18] sm:$0xff]
  %v38 = vld [vmem:[#allocation2 + $0x20] sm:$0xff]
  %v39 = vld [vmem:[#allocation2 + $0x28] sm:$0xff]
  %v40 = vld [vmem:[#allocation2 + $0x30] sm:$0xff]
  %v41 = vld [vmem:[#allocation2 + $0x38] sm:$0xff]
  %v42 = vld [vmem:[%s1] sm:$0xf]
  %v43 = vld [vmem:[%s1 + $0x4] sm:$0xf]
  %v44 = vld [vmem:[%s1 + $0x8] sm:$0xf]
  %v45 = vld [vmem:[%s1 + $0xc] sm:$0xf]
  %v46 = vld [vmem:[%s1 + $0x10] sm:$0xf]
  %v47 = vld [vmem:[%s1 + $0x14] sm:$0xf]
  %v48 = vld [vmem:[%s1 + $0x18] sm:$0xf]
  %v49 = vld [vmem:[%s1 + $0x1c] sm:$0xf]
  %v50 = vld [vmem:[%s1 + $0x20] sm:$0xf]
  %v51 = vld [vmem:[%s1 + $0x24] sm:$0xf]
  %v52 = vld [vmem:[%s1 + $0x28] sm:$0xf]
  %v53 = vld [vmem:[%s1 + $0x2c] sm:$0xf]
  %v54 = vld [vmem:[%s1 + $0x30] sm:$0xf]
  %v55 = vld [vmem:[%s1 + $0x34] sm:$0xf]
  %v56 = vld [vmem:[%s1 + $0x38] sm:$0xf]
  %v57 = vld [vmem:[%s1 + $0x3c] sm:$0xf]
  %v66 = vunpack.c.l.b16 %v26
  %v67 = vunpack.c.l.b16 %v27
  %v68 = vunpack.c.l.b16 %v28
  %v69 = vunpack.c.l.b16 %v29
  %v70 = vunpack.c.l.b16 %v30
  %v71 = vunpack.c.l.b16 %v31
  %v72 = vunpack.c.l.b16 %v32
  %v73 = vunpack.c.l.b16 %v33
  %v74 = vpack.c.b16 %v67, %v66
  %v75 = vpack.c.b16 %v69, %v68
  %v76 = vpack.c.b16 %v71, %v70
  %v77 = vpack.c.b16 %v73, %v72
  %v98 = vunpack.c.l.b16 %v42
  %v99 = vunpack.c.l.b16 %v43
  %v100 = vunpack.c.l.b16 %v44
  %v101 = vunpack.c.l.b16 %v45
  %v102 = vunpack.c.l.b16 %v46
  %v103 = vunpack.c.l.b16 %v47
  %v104 = vunpack.c.l.b16 %v48
  %v105 = vunpack.c.l.b16 %v49
  %v106 = vunpack.c.l.b16 %v50
  %v107 = vunpack.c.l.b16 %v51
  %v108 = vunpack.c.l.b16 %v52
  %v109 = vunpack.c.l.b16 %v53
  %v110 = vunpack.c.l.b16 %v54
  %v111 = vunpack.c.l.b16 %v55
  %v112 = vunpack.c.l.b16 %v56
  %v113 = vunpack.c.l.b16 %v57
  %v114 = vpack.c.b16 %v99, %v98
  %v115 = vpack.c.b16 %v101, %v100
  %v116 = vpack.c.b16 %v103, %v102
  %v117 = vpack.c.b16 %v105, %v104
  %v118 = vpack.c.b16 %v107, %v106
  %v119 = vpack.c.b16 %v109, %v108
  %v120 = vpack.c.b16 %v111, %v110
  %v121 = vpack.c.b16 %v113, %v112
  %130 = vmatpush.bf16.msra.mxu0 %v121
  %131 = vmatpush.bf16.msra.mxu0 %v120
  %132 = vmatpush.bf16.msra.mxu0 %v119
  %133 = vmatpush.bf16.msra.mxu0 %v118
  %134 = vmatpush.bf16.msra.mxu0 %v117
  %135 = vmatpush.bf16.msra.mxu0 %v116
  %136 = vmatpush.bf16.msra.mxu0 %v115
  %137 = vmatpush.bf16.msra.mxu0 %v114
  %138 = vmatmul.bf16.gmra.mxu0 %v74
  %v139 = vpop.f32.mrf.mxu0
  %v140 = vadd.f32 0.0, %v139
  %v141 = vpop.f32.mrf.mxu0
  %v142 = vadd.f32 0.0, %v141
  %143 = vmatmul.bf16.gmra.mxu0 %v75
  %v144 = vpop.f32.mrf.mxu0
  %v145 = vadd.f32 0.0, %v144
  %v146 = vpop.f32.mrf.mxu0
  %v147 = vadd.f32 0.0, %v146
  %148 = vmatmul.bf16.gmra.mxu0 %v76
  %v149 = vpop.f32.mrf.mxu0
  %v150 = vadd.f32 0.0, %v149
  %v151 = vpop.f32.mrf.mxu0
  %v152 = vadd.f32 0.0, %v151
  %153 = vmatmul.bf16.gmra.mxu0 %v77
  %v154 = vpop.f32.mrf.mxu0
  %v155 = vadd.f32 0.0, %v154
  %v156 = vpop.f32.mrf.mxu0
  %v157 = vadd.f32 0.0, %v156
  %158 = vdwg.mxu0
  %v159 = vadd.f32 %v34, %v140
  %v160 = vadd.f32 %v35, %v142
  %v161 = vadd.f32 %v36, %v145
  %v162 = vadd.f32 %v37, %v147
  %v163 = vadd.f32 %v38, %v150
  %v164 = vadd.f32 %v39, %v152
  %v165 = vadd.f32 %v40, %v155
  %v166 = vadd.f32 %v41, %v157
  %167 = vst [vmem:[#allocation2] sm:$0xff] %v159
  %168 = vst [vmem:[#allocation2 + $0x8] sm:$0xff] %v160
  %169 = vst [vmem:[#allocation2 + $0x10] sm:$0xff] %v161
  %170 = vst [vmem:[#allocation2 + $0x18] sm:$0xff] %v162
  %171 = vst [vmem:[#allocation2 + $0x20] sm:$0xff] %v163
  %172 = vst [vmem:[#allocation2 + $0x28] sm:$0xff] %v164
  %173 = vst [vmem:[#allocation2 + $0x30] sm:$0xff] %v165
  %174 = vst [vmem:[#allocation2 + $0x38] sm:$0xff] %v166
  // Predicated region
  $region18: #{unet_skip_block_output_forward.6} parent=0 // pred_check
    %p175 = pneg %p14
  $region19: #{unet_skip_block_output_forward.6} parent=0 // pred_check_branch
    %177 = sbr.rel (%p175) target = $region21
  $region20: #{unet_skip_block_output_forward.6} parent=0 // pred_region
    %v178 = vld [vmem:[#allocation2] sm:$0xff]
    %v179 = vld [vmem:[#allocation2 + $0x8] sm:$0xff]
    %v180 = vld [vmem:[#allocation2 + $0x10] sm:$0xff]
    %v181 = vld [vmem:[#allocation2 + $0x18] sm:$0xff]
    %v182 = vld [vmem:[#allocation2 + $0x20] sm:$0xff]
    %v183 = vld [vmem:[#allocation2 + $0x28] sm:$0xff]
    %v184 = vld [vmem:[#allocation2 + $0x30] sm:$0xff]
    %v185 = vld [vmem:[#allocation2 + $0x38] sm:$0xff]
    %v186 = vld [vmem:[%s2] sm:$0x1]
    %v188 = vperm.slane %v186, 0
    %v190 = vadd.f32 %v178, %v188
    %v191 = vadd.f32 %v179, %v188
    %v192 = vadd.f32 %v180, %v188
    %v193 = vadd.f32 %v181, %v188
    %v194 = vadd.f32 %v182, %v188
    %v195 = vadd.f32 %v183, %v188
    %v196 = vadd.f32 %v184, %v188
    %v197 = vadd.f32 %v185, %v188
    %v198 = vpack.c.bf16 %v190, %v190
    %v199 = vpack.c.bf16 %v191, %v191
    %v200 = vpack.c.bf16 %v192, %v192
    %v201 = vpack.c.bf16 %v193, %v193
    %v202 = vpack.c.bf16 %v194, %v194
    %v203 = vpack.c.bf16 %v195, %v195
    %v204 = vpack.c.bf16 %v196, %v196
    %v205 = vpack.c.bf16 %v197, %v197
    %206 = vst [vmem:[%s3] sm:$0xf] %v198
    %207 = vst [vmem:[%s3 + $0x4] sm:$0xf] %v199
    %208 = vst [vmem:[%s3 + $0x8] sm:$0xf] %v200
    %209 = vst [vmem:[%s3 + $0xc] sm:$0xf] %v201
    %210 = vst [vmem:[%s3 + $0x10] sm:$0xf] %v202
    %211 = vst [vmem:[%s3 + $0x14] sm:$0xf] %v203
    %212 = vst [vmem:[%s3 + $0x18] sm:$0xf] %v204
    %213 = vst [vmem:[%s3 + $0x1c] sm:$0xf] %v205
  $region21: #{unet_skip_block_output_forward.6} parent=0 // pred_fallthru
    _
  // Predicated region
  $region22: #{unet_skip_block_output_forward.6} parent=0 // pred_check
    _
  $region23: #{unet_skip_block_output_forward.6} parent=0 // pred_check_branch
    %215 = sbr.rel (0) target = $region25
  $region24: #{unet_skip_block_output_forward.6} parent=0 // pred_region
    _
  $region25: #{unet_skip_block_output_forward.6} parent=0 // pred_fallthru
    _
  // Predicated region
  $region26: #{unet_skip_block_output_forward.6} parent=0 // pred_check
    _
  $region27: #{unet_skip_block_output_forward.6} parent=0 // pred_check_branch
    %217 = sbr.rel (0) target = $region29
  $region28: #{unet_skip_block_output_forward.6} parent=0 // pred_region
    _
  $region29: #{unet_skip_block_output_forward.6} parent=0 // pred_fallthru
    _

// kernel: unet_skip_block_output_forward.7
$region0: #{unet_skip_block_output_forward.7}
  #allocation0 [shape = 'u32[]', space=smem, size = 0x4, offset = 0x4, fixed_abs, tag = 'smem constant byte address 0x4 - core index']
  #allocation1 [shape = 'u32[72,128]{1,0:T(1,128)}', space=vmem, size = 0x9000, scoped, tag = 'internal scratch']
  #allocation2 [shape = 'f32[16,128]{1,0:T(8,128)}', space=vmem, size = 0x2000, scoped, tag = 'scratch operand']
  %s0 = inlined_call_operand.vmem [shape: bf16[16,256], index: 0, kind: input, shape index: {}]
  %s1 = inlined_call_operand.vmem [shape: bf16[256,128], index: 1, kind: input, shape index: {}]
  %s2 = inlined_call_operand.vmem [shape: f32[1,128], index: 2, kind: input, shape index: {}]
  %s3 = inlined_call_operand.vmem [shape: bf16[16,128], index: 3, kind: output, shape index: {0}]
  %s4 = inlined_call_operand.vmem [shape: f32[4,128], index: 4, kind: output, shape index: {1}]
  %5 = xla_tuple %s3, %s4
  %s6 = sld [smem:[#allocation0]]
  $region38: #{unet_skip_block_output_forward.7} parent=0
    _
  %s8 = ssub.s32 1, %s6
  %s9 = scalar_select 0, %s8, %s6
  // Predicated region
  $region2: #{unet_skip_block_output_forward.7} parent=0 // pred_check
    _
  $region3: #{unet_skip_block_output_forward.7} parent=0 // pred_check_branch
    %11 = sbr.rel (0) target = $region5
  $region4: #{unet_skip_block_output_forward.7} parent=0 // pred_region
    _
  $region5: #{unet_skip_block_output_forward.7} parent=0 // pred_fallthru
    _
  // Predicated region
  $region6: #{unet_skip_block_output_forward.7} parent=0 // pred_check
    _
  $region7: #{unet_skip_block_output_forward.7} parent=0 // pred_check_branch
    %13 = sbr.rel (0) target = $region9
  $region8: #{unet_skip_block_output_forward.7} parent=0 // pred_region
    _
  $region9: #{unet_skip_block_output_forward.7} parent=0 // pred_fallthru
    _
  // Predicated region
  $region10: #{unet_skip_block_output_forward.7} parent=0 // pred_check
    _
  $region11: #{unet_skip_block_output_forward.7} parent=0 // pred_check_branch
    %15 = sbr.rel (0) target = $region13
  $region12: #{unet_skip_block_output_forward.7} parent=0 // pred_region
    _
  $region13: #{unet_skip_block_output_forward.7} parent=0 // pred_fallthru
    _
  %p16 = scmp.eq.s32.totalorder 0, 0
  // Predicated region
  $region14: #{unet_skip_block_output_forward.7} parent=0 // pred_check
    %p17 = pneg %p16
  $region15: #{unet_skip_block_output_forward.7} parent=0 // pred_check_branch
    %19 = sbr.rel (%p17) target = $region17
  $region16: #{unet_skip_block_output_forward.7} parent=0 // pred_region
    %20 = vst [vmem:[#allocation2] sm:$0xff] 0.0
    %21 = vst [vmem:[#allocation2 + $0x8] sm:$0xff] 0.0
  $region17: #{unet_skip_block_output_forward.7} parent=0 // pred_fallthru
    _
  %v22 = vld [vmem:[%s0] sm:$0xff]
  %v23 = vld [vmem:[%s0 + $0x8] sm:$0xff]
  %v24 = vunpack.c.l.bf16 %v22
  %v25 = vunpack.c.h.bf16 %v22
  %v26 = vunpack.c.l.bf16 %v23
  %v27 = vunpack.c.h.bf16 %v23
  %vm28 = vcmp.gt.f32.partialorder %v24, 0.0
  %vm29 = vcmp.gt.f32.partialorder %v25, 0.0
  %vm30 = vcmp.gt.f32.partialorder %v26, 0.0
  %vm31 = vcmp.gt.f32.partialorder %v27, 0.0
  %v32 = vmul.f32 %v24, 0.2
  %v33 = vmul.f32 %v25, 0.2
  %v34 = vmul.f32 %v26, 0.2
  %v35 = vmul.f32 %v27, 0.2
  %v36 = vsel %vm28, %v24, %v32
  %v37 = vsel %vm29, %v25, %v33
  %v38 = vsel %vm30, %v26, %v34
  %v39 = vsel %vm31, %v27, %v35
  %v40 = vld [vmem:[#allocation2] sm:$0xff]
  %v41 = vld [vmem:[#allocation2 + $0x8] sm:$0xff]
  %v42 = vpack.c.bf16 %v38, %v36
  %v43 = vpack.c.bf16 %v39, %v37
  %v44 = vld [vmem:[%s1] sm:$0xf]
  %v45 = vld [vmem:[%s1 + $0x4] sm:$0xf]
  %v46 = vld [vmem:[%s1 + $0x8] sm:$0xf]
  %v47 = vld [vmem:[%s1 + $0xc] sm:$0xf]
  %v48 = vld [vmem:[%s1 + $0x10] sm:$0xf]
  %v49 = vld [vmem:[%s1 + $0x14] sm:$0xf]
  %v50 = vld [vmem:[%s1 + $0x18] sm:$0xf]
  %v51 = vld [vmem:[%s1 + $0x1c] sm:$0xf]
  %v52 = vld [vmem:[%s1 + $0x20] sm:$0xf]
  %v53 = vld [vmem:[%s1 + $0x24] sm:$0xf]
  %v54 = vld [vmem:[%s1 + $0x28] sm:$0xf]
  %v55 = vld [vmem:[%s1 + $0x2c] sm:$0xf]
  %v56 = vld [vmem:[%s1 + $0x30] sm:$0xf]
  %v57 = vld [vmem:[%s1 + $0x34] sm:$0xf]
  %v58 = vld [vmem:[%s1 + $0x38] sm:$0xf]
  %v59 = vld [vmem:[%s1 + $0x3c] sm:$0xf]
  %v60 = vld [vmem:[%s1 + $0x40] sm:$0xf]
  %v61 = vld [vmem:[%s1 + $0x44] sm:$0xf]
  %v62 = vld [vmem:[%s1 + $0x48] sm:$0xf]
  %v63 = vld [vmem:[%s1 + $0x4c] sm:$0xf]
  %v64 = vld [vmem:[%s1 + $0x50] sm:$0xf]
  %v65 = vld [vmem:[%s1 + $0x54] sm:$0xf]
  %v66 = vld [vmem:[%s1 + $0x58] sm:$0xf]
  %v67 = vld [vmem:[%s1 + $0x5c] sm:$0xf]
  %v68 = vld [vmem:[%s1 + $0x60] sm:$0xf]
  %v69 = vld [vmem:[%s1 + $0x64] sm:$0xf]
  %v70 = vld [vmem:[%s1 + $0x68] sm:$0xf]
  %v71 = vld [vmem:[%s1 + $0x6c] sm:$0xf]
  %v72 = vld [vmem:[%s1 + $0x70] sm:$0xf]
  %v73 = vld [vmem:[%s1 + $0x74] sm:$0xf]
  %v74 = vld [vmem:[%s1 + $0x78] sm:$0xf]
  %v75 = vld [vmem:[%s1 + $0x7c] sm:$0xf]
  %v108 = vunpack.c.l.b16 %v44
  %v109 = vunpack.c.l.b16 %v45
  %v110 = vunpack.c.l.b16 %v46
  %v111 = vunpack.c.l.b16 %v47
  %v112 = vunpack.c.l.b16 %v48
  %v113 = vunpack.c.l.b16 %v49
  %v114 = vunpack.c.l.b16 %v50
  %v115 = vunpack.c.l.b16 %v51
  %v116 = vunpack.c.l.b16 %v52
  %v117 = vunpack.c.l.b16 %v53
  %v118 = vunpack.c.l.b16 %v54
  %v119 = vunpack.c.l.b16 %v55
  %v120 = vunpack.c.l.b16 %v56
  %v121 = vunpack.c.l.b16 %v57
  %v122 = vunpack.c.l.b16 %v58
  %v123 = vunpack.c.l.b16 %v59
  %v124 = vunpack.c.l.b16 %v60
  %v125 = vunpack.c.l.b16 %v61
  %v126 = vunpack.c.l.b16 %v62
  %v127 = vunpack.c.l.b16 %v63
  %v128 = vunpack.c.l.b16 %v64
  %v129 = vunpack.c.l.b16 %v65
  %v130 = vunpack.c.l.b16 %v66
  %v131 = vunpack.c.l.b16 %v67
  %v132 = vunpack.c.l.b16 %v68
  %v133 = vunpack.c.l.b16 %v69
  %v134 = vunpack.c.l.b16 %v70
  %v135 = vunpack.c.l.b16 %v71
  %v136 = vunpack.c.l.b16 %v72
  %v137 = vunpack.c.l.b16 %v73
  %v138 = vunpack.c.l.b16 %v74
  %v139 = vunpack.c.l.b16 %v75
  %v140 = vpack.c.b16 %v109, %v108
  %v141 = vpack.c.b16 %v111, %v110
  %v142 = vpack.c.b16 %v113, %v112
  %v143 = vpack.c.b16 %v115, %v114
  %v144 = vpack.c.b16 %v117, %v116
  %v145 = vpack.c.b16 %v119, %v118
  %v146 = vpack.c.b16 %v121, %v120
  %v147 = vpack.c.b16 %v123, %v122
  %v148 = vpack.c.b16 %v125, %v124
  %v149 = vpack.c.b16 %v127, %v126
  %v150 = vpack.c.b16 %v129, %v128
  %v151 = vpack.c.b16 %v131, %v130
  %v152 = vpack.c.b16 %v133, %v132
  %v153 = vpack.c.b16 %v135, %v134
  %v154 = vpack.c.b16 %v137, %v136
  %v155 = vpack.c.b16 %v139, %v138
  %172 = vmatpush.bf16.msra.mxu0 %v147
  %173 = vmatpush.bf16.msra.mxu0 %v146
  %174 = vmatpush.bf16.msra.mxu0 %v145
  %175 = vmatpush.bf16.msra.mxu0 %v144
  %176 = vmatpush.bf16.msra.mxu0 %v143
  %177 = vmatpush.bf16.msra.mxu0 %v142
  %178 = vmatpush.bf16.msra.mxu0 %v141
  %179 = vmatpush.bf16.msra.mxu0 %v140
  %180 = vmatmul.bf16.gmra.mxu0 %v42
  %v181 = vpop.f32.mrf.mxu0
  %v182 = vadd.f32 0.0, %v181
  %v183 = vpop.f32.mrf.mxu0
  %v184 = vadd.f32 0.0, %v183
  %185 = vdwg.mxu0
  %186 = vmatpush.bf16.msra.mxu0 %v155
  %187 = vmatpush.bf16.msra.mxu0 %v154
  %188 = vmatpush.bf16.msra.mxu0 %v153
  %189 = vmatpush.bf16.msra.mxu0 %v152
  %190 = vmatpush.bf16.msra.mxu0 %v151
  %191 = vmatpush.bf16.msra.mxu0 %v150
  %192 = vmatpush.bf16.msra.mxu0 %v149
  %193 = vmatpush.bf16.msra.mxu0 %v148
  %194 = vmatmul.bf16.gmra.mxu0 %v43
  %v195 = vpop.f32.mrf.mxu0
  %v196 = vadd.f32 %v182, %v195
  %v197 = vpop.f32.mrf.mxu0
  %v198 = vadd.f32 %v184, %v197
  %199 = vdwg.mxu0
  %v200 = vadd.f32 %v40, %v196
  %v201 = vadd.f32 %v41, %v198
  %202 = vst [vmem:[#allocation2] sm:$0xff] %v200
  %203 = vst [vmem:[#allocation2 + $0x8] sm:$0xff] %v201
  // Predicated region
  $region18: #{unet_skip_block_output_forward.7} parent=0 // pred_check
    %p204 = pneg %p16
  $region19: #{unet_skip_block_output_forward.7} parent=0 // pred_check_branch
    %206 = sbr.rel (%p204) target = $region21
  $region20: #{unet_skip_block_output_forward.7} parent=0 // pred_region
    %v207 = vld [vmem:[#allocation2] sm:$0xff]
    %v208 = vld [vmem:[#allocation2 + $0x8] sm:$0xff]
    %v209 = vld [vmem:[%s2] sm:$0x1]
    %v211 = vperm.slane %v209, 0
    %v213 = vadd.f32 %v207, %v211
    %v214 = vadd.f32 %v208, %v211
    %v215 = vpack.c.bf16 %v213, %v213
    %v216 = vpack.c.bf16 %v214, %v214
    %217 = vst [vmem:[%s3] sm:$0xf] %v215
    %218 = vst [vmem:[%s3 + $0x4] sm:$0xf] %v216
    %v219 = vunpack.c.l.bf16 %v215
    %v220 = vunpack.c.l.bf16 %v216
    %v221 = vlaneseq
    %v222 = vshrl.u32 %v221, 7
    %v223 = vadd.s32 %v222, 8
    %vm224 = vcmp.lt.s32.totalorder %v222, 8
    %vm225 = vcmp.lt.s32.totalorder %v223, 8
    %v226 = vsel %vm224, %v219, 0.0
    %v227 = vsel %vm225, %v220, 0.0
    %v228 = vadd.f32 %v226, %v227
    %v229 = vrot.slane %v228, 4
    %v230 = vadd.f32 %v228, %v229
    %v231 = vrot.slane %v230, 2
    %v232 = vadd.f32 %v230, %v231
    %v233 = vrot.slane %v232, 1
    %v234 = vadd.f32 %v232, %v233
    %v235 = vmul.f32 %v226, %v226
    %v236 = vmul.f32 %v227, %v227
    %v237 = vadd.f32 %v235, %v236
    %v238 = vrot.slane %v237, 4
    %v239 = vadd.f32 %v237, %v238
    %v240 = vrot.slane %v239, 2
    %v241 = vadd.f32 %v239, %v240
    %v242 = vrot.slane %v241, 1
    %v243 = vadd.f32 %v241, %v242
    %vm244 = vcmp.ge.s32.totalorder %v222, 8
    %vm245 = vcmp.ge.s32.totalorder %v223, 8
    %v246 = vsel %vm244, %v219, 0.0
    %v247 = vsel %vm245, %v220, 0.0
    %v248 = vadd.f32 %v246, %v247
    %v249 = vrot.slane %v248, 4
    %v250 = vadd.f32 %v248, %v249
    %v251 = vrot.slane %v250, 2
    %v252 = vadd.f32 %v250, %v251
    %v253 = vrot.slane %v252, 1
    %v254 = vadd.f32 %v252, %v253
    %v255 = vmul.f32 %v246, %v246
    %v256 = vmul.f32 %v247, %v247
    %v257 = vadd.f32 %v255, %v256
    %v258 = vrot.slane %v257, 4
    %v259 = vadd.f32 %v257, %v258
    %v260 = vrot.slane %v259, 2
    %v261 = vadd.f32 %v259, %v260
    %v262 = vrot.slane %v261, 1
    %v263 = vadd.f32 %v261, %v262
    %vm264 = vcmask 1040384
    %v265 = vsel %vm264, %v234, %v243
    %vm266 = vcmask 1041408
    %v267 = vsel %vm266, %v265, %v254
    %vm268 = vcmask 1042432
    %v269 = vsel %vm268, %v267, %v263
    %270 = vst [vmem:[%s4] sm:$0xf] %v269
  $region21: #{unet_skip_block_output_forward.7} parent=0 // pred_fallthru
    _
  // Predicated region
  $region22: #{unet_skip_block_output_forward.7} parent=0 // pred_check
    _
  $region23: #{unet_skip_block_output_forward.7} parent=0 // pred_check_branch
    %272 = sbr.rel (0) target = $region25
  $region24: #{unet_skip_block_output_forward.7} parent=0 // pred_region
    _
  $region25: #{unet_skip_block_output_forward.7} parent=0 // pred_fallthru
    _
  // Predicated region
  $region26: #{unet_skip_block_output_forward.7} parent=0 // pred_check
    _
  $region27: #{unet_skip_block_output_forward.7} parent=0 // pred_check_branch
    %274 = sbr.rel (0) target = $region29
  $region28: #{unet_skip_block_output_forward.7} parent=0 // pred_region
    _
  $region29: #{unet_skip_block_output_forward.7} parent=0 // pred_fallthru
    _
  // Predicated region
  $region30: #{unet_skip_block_output_forward.7} parent=0 // pred_check
    _
  $region31: #{unet_skip_block_output_forward.7} parent=0 // pred_check_branch
    %276 = sbr.rel (0) target = $region33
  $region32: #{unet_skip_block_output_forward.7} parent=0 // pred_region
    _
  $region33: #{unet_skip_block_output_forward.7} parent=0 // pred_fallthru
    _
  // Predicated region
  $region34: #{unet_skip_block_output_forward.7} parent=0 // pred_check
    _
  $region35: #{unet_skip_block_output_forward.7} parent=0 // pred_check_branch
    %278 = sbr.rel (0) target = $region37
  $region36: #{unet_skip_block_output_forward.7} parent=0 // pred_region
    _
  $region37: #{unet_skip_block_output_forward.7} parent=0 // pred_fallthru
    _

// kernel: unet_skip_block_output_forward.8
$region0: #{unet_skip_block_output_forward.8}
  #allocation0 [shape = 'u32[]', space=smem, size = 0x4, offset = 0x4, fixed_abs, tag = 'smem constant byte address 0x4 - core index']
  #allocation1 [shape = 'u32[72,128]{1,0:T(1,128)}', space=vmem, size = 0x9000, scoped, tag = 'internal scratch']
  #allocation2 [shape = 'f32[16,128]{1,0:T(8,128)}', space=vmem, size = 0x2000, scoped, tag = 'scratch operand']
  %s0 = inlined_call_operand.vmem [shape: bf16[16,512], index: 0, kind: input, shape index: {}]
  %s1 = inlined_call_operand.vmem [shape: f32[2,512], index: 1, kind: input, shape index: {}]
  %s2 = inlined_call_operand.vmem [shape: f32[2,512], index: 2, kind: input, shape index: {}]
  %s3 = inlined_call_operand.vmem [shape: bf16[512,128], index: 3, kind: input, shape index: {}]
  %s4 = inlined_call_operand.vmem [shape: f32[1,128], index: 4, kind: input, shape index: {}]
  %s5 = inlined_call_operand.vmem [shape: f32[16,128], index: 5, kind: output, shape index: {}]
  %s6 = sld [smem:[#allocation0]]
  $region38: #{unet_skip_block_output_forward.8} parent=0
    _
  %s8 = ssub.s32 1, %s6
  %s9 = scalar_select 0, %s8, %s6
  // Predicated region
  $region2: #{unet_skip_block_output_forward.8} parent=0 // pred_check
    _
  $region3: #{unet_skip_block_output_forward.8} parent=0 // pred_check_branch
    %11 = sbr.rel (0) target = $region5
  $region4: #{unet_skip_block_output_forward.8} parent=0 // pred_region
    _
  $region5: #{unet_skip_block_output_forward.8} parent=0 // pred_fallthru
    _
  // Predicated region
  $region6: #{unet_skip_block_output_forward.8} parent=0 // pred_check
    _
  $region7: #{unet_skip_block_output_forward.8} parent=0 // pred_check_branch
    %13 = sbr.rel (0) target = $region9
  $region8: #{unet_skip_block_output_forward.8} parent=0 // pred_region
    _
  $region9: #{unet_skip_block_output_forward.8} parent=0 // pred_fallthru
    _
  // Predicated region
  $region10: #{unet_skip_block_output_forward.8} parent=0 // pred_check
    _
  $region11: #{unet_skip_block_output_forward.8} parent=0 // pred_check_branch
    %15 = sbr.rel (0) target = $region13
  $region12: #{unet_skip_block_output_forward.8} parent=0 // pred_region
    _
  $region13: #{unet_skip_block_output_forward.8} parent=0 // pred_fallthru
    _
  // Predicated region
  $region14: #{unet_skip_block_output_forward.8} parent=0 // pred_check
    _
  $region15: #{unet_skip_block_output_forward.8} parent=0 // pred_check_branch
    %17 = sbr.rel (0) target = $region17
  $region16: #{unet_skip_block_output_forward.8} parent=0 // pred_region
    _
  $region17: #{unet_skip_block_output_forward.8} parent=0 // pred_fallthru
    _
  // Predicated region
  $region18: #{unet_skip_block_output_forward.8} parent=0 // pred_check
    _
  $region19: #{unet_skip_block_output_forward.8} parent=0 // pred_check_branch
    %19 = sbr.rel (0) target = $region21
  $region20: #{unet_skip_block_output_forward.8} parent=0 // pred_region
    _
  $region21: #{unet_skip_block_output_forward.8} parent=0 // pred_fallthru
    _
  %p20 = scmp.eq.s32.totalorder 0, 0
  // Predicated region
  $region22: #{unet_skip_block_output_forward.8} parent=0 // pred_check
    %p21 = pneg %p20
  $region23: #{unet_skip_block_output_forward.8} parent=0 // pred_check_branch
    %23 = sbr.rel (%p21) target = $region25
  $region24: #{unet_skip_block_output_forward.8} parent=0 // pred_region
    %24 = vst [vmem:[#allocation2] sm:$0xff] 0.0
    %25 = vst [vmem:[#allocation2 + $0x8] sm:$0xff] 0.0
  $region25: #{unet_skip_block_output_forward.8} parent=0 // pred_fallthru
    _
  %v26 = vld [vmem:[%s0] sm:$0xff]
  %v27 = vld [vmem:[%s0 + $0x8] sm:$0xff]
  %v28 = vld [vmem:[%s0 + $0x10] sm:$0xff]
  %v29 = vld [vmem:[%s0 + $0x18] sm:$0xff]
  %v30 = vunpack.c.l.bf16 %v26
  %v31 = vunpack.c.h.bf16 %v26
  %v32 = vunpack.c.l.bf16 %v27
  %v33 = vunpack.c.h.bf16 %v27
  %v34 = vunpack.c.l.bf16 %v28
  %v35 = vunpack.c.h.bf16 %v28
  %v36 = vunpack.c.l.bf16 %v29
  %v37 = vunpack.c.h.bf16 %v29
  %v38 = vlaneseq
  %v39 = vshrl.u32 %v38, 7
  %v40 = vadd.s32 %v39, 8
  %s41 = scalar_lea.vmem %s1, 1
  %v42 = vld [vmem:[%s41] ss:$2 sm:$0xf]
  %v44 = vperm.slane %v42, 0
  %v45 = vperm.slane %v42, 1
  %v46 = vperm.slane %v42, 2
  %v47 = vperm.slane %v42, 3
  %s52 = scalar_lea.vmem %s2, 1
  %v53 = vld [vmem:[%s52] ss:$2 sm:$0xf]
  %v55 = vperm.slane %v53, 0
  %v56 = vperm.slane %v53, 1
  %v57 = vperm.slane %v53, 2
  %v58 = vperm.slane %v53, 3
  %vm63 = vcmp.lt.s32.totalorder %v39, 2
  %vm64 = vcmp.lt.s32.totalorder %v40, 2
  %v65 = vld [vmem:[%s1] ss:$2 sm:$0xf]
  %v67 = vperm.slane %v65, 0
  %v68 = vperm.slane %v65, 1
  %v69 = vperm.slane %v65, 2
  %v70 = vperm.slane %v65, 3
  %v75 = vsel %vm63, %v67, %v44
  %v76 = vsel %vm63, %v68, %v45
  %v77 = vsel %vm63, %v69, %v46
  %v78 = vsel %vm63, %v70, %v47
  %v79 = vsel %vm64, %v67, %v44
  %v80 = vsel %vm64, %v68, %v45
  %v81 = vsel %vm64, %v69, %v46
  %v82 = vsel %vm64, %v70, %v47
  %v83 = vld [vmem:[%s2] ss:$2 sm:$0xf]
  %v85 = vperm.slane %v83, 0
  %v86 = vperm.slane %v83, 1
  %v87 = vperm.slane %v83, 2
  %v88 = vperm.slane %v83, 3
  %v93 = vsel %vm63, %v85, %v55
  %v94 = vsel %vm63, %v86, %v56
  %v95 = vsel %vm63, %v87, %v57
  %v96 = vsel %vm63, %v88, %v58
  %v97 = vsel %vm64, %v85, %v55
  %v98 = vsel %vm64, %v86, %v56
  %v99 = vsel %vm64, %v87, %v57
  %v100 = vsel %vm64, %v88, %v58
  %v101 = vmul.f32 %v30, %v75
  %v102 = vmul.f32 %v31, %v76
  %v103 = vmul.f32 %v32, %v77
  %v104 = vmul.f32 %v33, %v78
  %v105 = vmul.f32 %v34, %v79
  %v106 = vmul.f32 %v35, %v80
  %v107 = vmul.f32 %v36, %v81
  %v108 = vmul.f32 %v37, %v82
  %v109 = vadd.f32 %v101, %v93
  %v110 = vadd.f32 %v102, %v94
  %v111 = vadd.f32 %v103, %v95
  %v112 = vadd.f32 %v104, %v96
  %v113 = vadd.f32 %v105, %v97
  %v114 = vadd.f32 %v106, %v98
  %v115 = vadd.f32 %v107, %v99
  %v116 = vadd.f32 %v108, %v100
  %vm117 = vcmp.gt.f32.partialorder %v109, 0.0
  %vm118 = vcmp.gt.f32.partialorder %v110, 0.0
  %vm119 = vcmp.gt.f32.partialorder %v111, 0.0
  %vm120 = vcmp.gt.f32.partialorder %v112, 0.0
  %vm121 = vcmp.gt.f32.partialorder %v113, 0.0
  %vm122 = vcmp.gt.f32.partialorder %v114, 0.0
  %vm123 = vcmp.gt.f32.partialorder %v115, 0.0
  %vm124 = vcmp.gt.f32.partialorder %v116, 0.0
  %v125 = vmul.f32 %v109, 0.2
  %v126 = vmul.f32 %v110, 0.2
  %v127 = vmul.f32 %v111, 0.2
  %v128 = vmul.f32 %v112, 0.2
  %v129 = vmul.f32 %v113, 0.2
  %v130 = vmul.f32 %v114, 0.2
  %v131 = vmul.f32 %v115, 0.2
  %v132 = vmul.f32 %v116, 0.2
  %v133 = vsel %vm117, %v109, %v125
  %v134 = vsel %vm118, %v110, %v126
  %v135 = vsel %vm119, %v111, %v127
  %v136 = vsel %vm120, %v112, %v128
  %v137 = vsel %vm121, %v113, %v129
  %v138 = vsel %vm122, %v114, %v130
  %v139 = vsel %vm123, %v115, %v131
  %v140 = vsel %vm124, %v116, %v132
  %v141 = vld [vmem:[#allocation2] sm:$0xff]
  %v142 = vld [vmem:[#allocation2 + $0x8] sm:$0xff]
  %v143 = vpack.c.bf16 %v137, %v133
  %v144 = vpack.c.bf16 %v138, %v134
  %v145 = vpack.c.bf16 %v139, %v135
  %v146 = vpack.c.bf16 %v140, %v136
  %v147 = vld [vmem:[%s3] sm:$0xf]
  %v148 = vld [vmem:[%s3 + $0x4] sm:$0xf]
  %v149 = vld [vmem:[%s3 + $0x8] sm:$0xf]
  %v150 = vld [vmem:[%s3 + $0xc] sm:$0xf]
  %v151 = vld [vmem:[%s3 + $0x10] sm:$0xf]
  %v152 = vld [vmem:[%s3 + $0x14] sm:$0xf]
  %v153 = vld [vmem:[%s3 + $0x18] sm:$0xf]
  %v154 = vld [vmem:[%s3 + $0x1c] sm:$0xf]
  %v155 = vld [vmem:[%s3 + $0x20] sm:$0xf]
  %v156 = vld [vmem:[%s3 + $0x24] sm:$0xf]
  %v157 = vld [vmem:[%s3 + $0x28] sm:$0xf]
  %v158 = vld [vmem:[%s3 + $0x2c] sm:$0xf]
  %v159 = vld [vmem:[%s3 + $0x30] sm:$0xf]
  %v160 = vld [vmem:[%s3 + $0x34] sm:$0xf]
  %v161 = vld [vmem:[%s3 + $0x38] sm:$0xf]
  %v162 = vld [vmem:[%s3 + $0x3c] sm:$0xf]
  %v163 = vld [vmem:[%s3 + $0x40] sm:$0xf]
  %v164 = vld [vmem:[%s3 + $0x44] sm:$0xf]
  %v165 = vld [vmem:[%s3 + $0x48] sm:$0xf]
  %v166 = vld [vmem:[%s3 + $0x4c] sm:$0xf]
  %v167 = vld [vmem:[%s3 + $0x50] sm:$0xf]
  %v168 = vld [vmem:[%s3 + $0x54] sm:$0xf]
  %v169 = vld [vmem:[%s3 + $0x58] sm:$0xf]
  %v170 = vld [vmem:[%s3 + $0x5c] sm:$0xf]
  %v171 = vld [vmem:[%s3 + $0x60] sm:$0xf]
  %v172 = vld [vmem:[%s3 + $0x64] sm:$0xf]
  %v173 = vld [vmem:[%s3 + $0x68] sm:$0xf]
  %v174 = vld [vmem:[%s3 + $0x6c] sm:$0xf]
  %v175 = vld [vmem:[%s3 + $0x70] sm:$0xf]
  %v176 = vld [vmem:[%s3 + $0x74] sm:$0xf]
  %v177 = vld [vmem:[%s3 + $0x78] sm:$0xf]
  %v178 = vld [vmem:[%s3 + $0x7c] sm:$0xf]
  %v179 = vld [vmem:[%s3 + $0x80] sm:$0xf]
  %v180 = vld [vmem:[%s3 + $0x84] sm:$0xf]
  %v181 = vld [vmem:[%s3 + $0x88] sm:$0xf]
  %v182 = vld [vmem:[%s3 + $0x8c] sm:$0xf]
  %v183 = vld [vmem:[%s3 + $0x90] sm:$0xf]
  %v184 = vld [vmem:[%s3 + $0x94] sm:$0xf]
  %v185 = vld [vmem:[%s3 + $0x98] sm:$0xf]
  %v186 = vld [vmem:[%s3 + $0x9c] sm:$0xf]
  %v187 = vld [vmem:[%s3 + $0xa0] sm:$0xf]
  %v188 = vld [vmem:[%s3 + $0xa4] sm:$0xf]
  %v189 = vld [vmem:[%s3 + $0xa8] sm:$0xf]
  %v190 = vld [vmem:[%s3 + $0xac] sm:$0xf]
  %v191 = vld [vmem:[%s3 + $0xb0] sm:$0xf]
  %v192 = vld [vmem:[%s3 + $0xb4] sm:$0xf]
  %v193 = vld [vmem:[%s3 + $0xb8] sm:$0xf]
  %v194 = vld [vmem:[%s3 + $0xbc] sm:$0xf]
  %v195 = vld [vmem:[%s3 + $0xc0] sm:$0xf]
  %v196 = vld [vmem:[%s3 + $0xc4] sm:$0xf]
  %v197 = vld [vmem:[%s3 + $0xc8] sm:$0xf]
  %v198 = vld [vmem:[%s3 + $0xcc] sm:$0xf]
  %v199 = vld [vmem:[%s3 + $0xd0] sm:$0xf]
  %v200 = vld [vmem:[%s3 + $0xd4] sm:$0xf]
  %v201 = vld [vmem:[%s3 + $0xd8] sm:$0xf]
  %v202 = vld [vmem:[%s3 + $0xdc] sm:$0xf]
  %v203 = vld [vmem:[%s3 + $0xe0] sm:$0xf]
  %v204 = vld [vmem:[%s3 + $0xe4] sm:$0xf]
  %v205 = vld [vmem:[%s3 + $0xe8] sm:$0xf]
  %v206 = vld [vmem:[%s3 + $0xec] sm:$0xf]
  %v207 = vld [vmem:[%s3 + $0xf0] sm:$0xf]
  %v208 = vld [vmem:[%s3 + $0xf4] sm:$0xf]
  %v209 = vld [vmem:[%s3 + $0xf8] sm:$0xf]
  %v210 = vld [vmem:[%s3 + $0xfc] sm:$0xf]
  %v275 = vunpack.c.l.b16 %v147
  %v276 = vunpack.c.l.b16 %v148
  %v277 = vunpack.c.l.b16 %v149
  %v278 = vunpack.c.l.b16 %v150
  %v279 = vunpack.c.l.b16 %v151
  %v280 = vunpack.c.l.b16 %v152
  %v281 = vunpack.c.l.b16 %v153
  %v282 = vunpack.c.l.b16 %v154
  %v283 = vunpack.c.l.b16 %v155
  %v284 = vunpack.c.l.b16 %v156
  %v285 = vunpack.c.l.b16 %v157
  %v286 = vunpack.c.l.b16 %v158
  %v287 = vunpack.c.l.b16 %v159
  %v288 = vunpack.c.l.b16 %v160
  %v289 = vunpack.c.l.b16 %v161
  %v290 = vunpack.c.l.b16 %v162
  %v291 = vunpack.c.l.b16 %v163
  %v292 = vunpack.c.l.b16 %v164
  %v293 = vunpack.c.l.b16 %v165
  %v294 = vunpack.c.l.b16 %v166
  %v295 = vunpack.c.l.b16 %v167
  %v296 = vunpack.c.l.b16 %v168
  %v297 = vunpack.c.l.b16 %v169
  %v298 = vunpack.c.l.b16 %v170
  %v299 = vunpack.c.l.b16 %v171
  %v300 = vunpack.c.l.b16 %v172
  %v301 = vunpack.c.l.b16 %v173
  %v302 = vunpack.c.l.b16 %v174
  %v303 = vunpack.c.l.b16 %v175
  %v304 = vunpack.c.l.b16 %v176
  %v305 = vunpack.c.l.b16 %v177
  %v306 = vunpack.c.l.b16 %v178
  %v307 = vunpack.c.l.b16 %v179
  %v308 = vunpack.c.l.b16 %v180
  %v309 = vunpack.c.l.b16 %v181
  %v310 = vunpack.c.l.b16 %v182
  %v311 = vunpack.c.l.b16 %v183
  %v312 = vunpack.c.l.b16 %v184
  %v313 = vunpack.c.l.b16 %v185
  %v314 = vunpack.c.l.b16 %v186
  %v315 = vunpack.c.l.b16 %v187
  %v316 = vunpack.c.l.b16 %v188
  %v317 = vunpack.c.l.b16 %v189
  %v318 = vunpack.c.l.b16 %v190
  %v319 = vunpack.c.l.b16 %v191
  %v320 = vunpack.c.l.b16 %v192
  %v321 = vunpack.c.l.b16 %v193
  %v322 = vunpack.c.l.b16 %v194
  %v323 = vunpack.c.l.b16 %v195
  %v324 = vunpack.c.l.b16 %v196
  %v325 = vunpack.c.l.b16 %v197
  %v326 = vunpack.c.l.b16 %v198
  %v327 = vunpack.c.l.b16 %v199
  %v328 = vunpack.c.l.b16 %v200
  %v329 = vunpack.c.l.b16 %v201
  %v330 = vunpack.c.l.b16 %v202
  %v331 = vunpack.c.l.b16 %v203
  %v332 = vunpack.c.l.b16 %v204
  %v333 = vunpack.c.l.b16 %v205
  %v334 = vunpack.c.l.b16 %v206
  %v335 = vunpack.c.l.b16 %v207
  %v336 = vunpack.c.l.b16 %v208
  %v337 = vunpack.c.l.b16 %v209
  %v338 = vunpack.c.l.b16 %v210
  %v339 = vpack.c.b16 %v276, %v275
  %v340 = vpack.c.b16 %v278, %v277
  %v341 = vpack.c.b16 %v280, %v279
  %v342 = vpack.c.b16 %v282, %v281
  %v343 = vpack.c.b16 %v284, %v283
  %v344 = vpack.c.b16 %v286, %v285
  %v345 = vpack.c.b16 %v288, %v287
  %v346 = vpack.c.b16 %v290, %v289
  %v347 = vpack.c.b16 %v292, %v291
  %v348 = vpack.c.b16 %v294, %v293
  %v349 = vpack.c.b16 %v296, %v295
  %v350 = vpack.c.b16 %v298, %v297
  %v351 = vpack.c.b16 %v300, %v299
  %v352 = vpack.c.b16 %v302, %v301
  %v353 = vpack.c.b16 %v304, %v303
  %v354 = vpack.c.b16 %v306, %v305
  %v355 = vpack.c.b16 %v308, %v307
  %v356 = vpack.c.b16 %v310, %v309
  %v357 = vpack.c.b16 %v312, %v311
  %v358 = vpack.c.b16 %v314, %v313
  %v359 = vpack.c.b16 %v316, %v315
  %v360 = vpack.c.b16 %v318, %v317
  %v361 = vpack.c.b16 %v320, %v319
  %v362 = vpack.c.b16 %v322, %v321
  %v363 = vpack.c.b16 %v324, %v323
  %v364 = vpack.c.b16 %v326, %v325
  %v365 = vpack.c.b16 %v328, %v327
  %v366 = vpack.c.b16 %v330, %v329
  %v367 = vpack.c.b16 %v332, %v331
  %v368 = vpack.c.b16 %v334, %v333
  %v369 = vpack.c.b16 %v336, %v335
  %v370 = vpack.c.b16 %v338, %v337
  %403 = vmatpush.bf16.msra.mxu0 %v346
  %404 = vmatpush.bf16.msra.mxu0 %v345
  %405 = vmatpush.bf16.msra.mxu0 %v344
  %406 = vmatpush.bf16.msra.mxu0 %v343
  %407 = vmatpush.bf16.msra.mxu0 %v342
  %408 = vmatpush.bf16.msra.mxu0 %v341
  %409 = vmatpush.bf16.msra.mxu0 %v340
  %410 = vmatpush.bf16.msra.mxu0 %v339
  %411 = vmatmul.bf16.gmra.mxu0 %v143
  %v412 = vpop.f32.mrf.mxu0
  %v413 = vadd.f32 0.0, %v412
  %v414 = vpop.f32.mrf.mxu0
  %v415 = vadd.f32 0.0, %v414
  %416 = vdwg.mxu0
  %417 = vmatpush.bf16.msra.mxu0 %v354
  %418 = vmatpush.bf16.msra.mxu0 %v353
  %419 = vmatpush.bf16.msra.mxu0 %v352
  %420 = vmatpush.bf16.msra.mxu0 %v351
  %421 = vmatpush.bf16.msra.mxu0 %v350
  %422 = vmatpush.bf16.msra.mxu0 %v349
  %423 = vmatpush.bf16.msra.mxu0 %v348
  %424 = vmatpush.bf16.msra.mxu0 %v347
  %425 = vmatmul.bf16.gmra.mxu0 %v144
  %v426 = vpop.f32.mrf.mxu0
  %v427 = vadd.f32 %v413, %v426
  %v428 = vpop.f32.mrf.mxu0
  %v429 = vadd.f32 %v415, %v428
  %430 = vdwg.mxu0
  %431 = vmatpush.bf16.msra.mxu0 %v362
  %432 = vmatpush.bf16.msra.mxu0 %v361
  %433 = vmatpush.bf16.msra.mxu0 %v360
  %434 = vmatpush.bf16.msra.mxu0 %v359
  %435 = vmatpush.bf16.msra.mxu0 %v358
  %436 = vmatpush.bf16.msra.mxu0 %v357
  %437 = vmatpush.bf16.msra.mxu0 %v356
  %438 = vmatpush.bf16.msra.mxu0 %v355
  %439 = vmatmul.bf16.gmra.mxu0 %v145
  %v440 = vpop.f32.mrf.mxu0
  %v441 = vadd.f32 %v427, %v440
  %v442 = vpop.f32.mrf.mxu0
  %v443 = vadd.f32 %v429, %v442
  %444 = vdwg.mxu0
  %445 = vmatpush.bf16.msra.mxu0 %v370
  %446 = vmatpush.bf16.msra.mxu0 %v369
  %447 = vmatpush.bf16.msra.mxu0 %v368
  %448 = vmatpush.bf16.msra.mxu0 %v367
  %449 = vmatpush.bf16.msra.mxu0 %v366
  %450 = vmatpush.bf16.msra.mxu0 %v365
  %451 = vmatpush.bf16.msra.mxu0 %v364
  %452 = vmatpush.bf16.msra.mxu0 %v363
  %453 = vmatmul.bf16.gmra.mxu0 %v146
  %v454 = vpop.f32.mrf.mxu0
  %v455 = vadd.f32 %v441, %v454
  %v456 = vpop.f32.mrf.mxu0
  %v457 = vadd.f32 %v443, %v456
  %458 = vdwg.mxu0
  %v459 = vadd.f32 %v141, %v455
  %v460 = vadd.f32 %v142, %v457
  %461 = vst [vmem:[#allocation2] sm:$0xff] %v459
  %462 = vst [vmem:[#allocation2 + $0x8] sm:$0xff] %v460
  // Predicated region
  $region26: #{unet_skip_block_output_forward.8} parent=0 // pred_check
    %p463 = pneg %p20
  $region27: #{unet_skip_block_output_forward.8} parent=0 // pred_check_branch
    %465 = sbr.rel (%p463) target = $region29
  $region28: #{unet_skip_block_output_forward.8} parent=0 // pred_region
    %v466 = vld [vmem:[#allocation2] sm:$0xff]
    %v467 = vld [vmem:[#allocation2 + $0x8] sm:$0xff]
    %v468 = vld [vmem:[%s4] sm:$0x1]
    %v470 = vperm.slane %v468, 0
    %v472 = vadd.f32 %v466, %v470
    %v473 = vadd.f32 %v467, %v470
    %474 = vst [vmem:[%s5] sm:$0xff] %v472
    %475 = vst [vmem:[%s5 + $0x8] sm:$0xff] %v473
  $region29: #{unet_skip_block_output_forward.8} parent=0 // pred_fallthru
    _
  // Predicated region
  $region30: #{unet_skip_block_output_forward.8} parent=0 // pred_check
    _
  $region31: #{unet_skip_block_output_forward.8} parent=0 // pred_check_branch
    %477 = sbr.rel (0) target = $region33
  $region32: #{unet_skip_block_output_forward.8} parent=0 // pred_region
    _
  $region33: #{unet_skip_block_output_forward.8} parent=0 // pred_fallthru
    _
  // Predicated region
  $region34: #{unet_skip_block_output_forward.8} parent=0 // pred_check
    _
  $region35: #{unet_skip_block_output_forward.8} parent=0 // pred_check_branch
    %479 = sbr.rel (0) target = $region37
  $region36: #{unet_skip_block_output_forward.8} parent=0 // pred_region
    _
  $region37: #{unet_skip_block_output_forward.8} parent=0 // pred_fallthru
    _

// kernel: unet_skip_block_output_forward.9
$region0: #{unet_skip_block_output_forward.9}
  #allocation0 [shape = 'u32[]', space=smem, size = 0x4, offset = 0x4, fixed_abs, tag = 'smem constant byte address 0x4 - core index']
  #allocation1 [shape = 'u32[72,128]{1,0:T(1,128)}', space=vmem, size = 0x9000, scoped, tag = 'internal scratch']
  #allocation2 [shape = 'f32[16,128]{1,0:T(8,128)}', space=vmem, size = 0x2000, scoped, tag = 'scratch operand']
  %s0 = inlined_call_operand.vmem [shape: bf16[16,128], index: 0, kind: input, shape index: {}]
  %s1 = inlined_call_operand.vmem [shape: bf16[128,128], index: 1, kind: input, shape index: {}]
  %s2 = inlined_call_operand.vmem [shape: f32[1,128], index: 2, kind: input, shape index: {}]
  %s3 = inlined_call_operand.vmem [shape: bf16[16,128], index: 3, kind: output, shape index: {}]
  %s4 = sld [smem:[#allocation0]]
  $region30: #{unet_skip_block_output_forward.9} parent=0
    _
  %s6 = ssub.s32 1, %s4
  %s7 = scalar_select 0, %s6, %s4
  // Predicated region
  $region2: #{unet_skip_block_output_forward.9} parent=0 // pred_check
    _
  $region3: #{unet_skip_block_output_forward.9} parent=0 // pred_check_branch
    %9 = sbr.rel (0) target = $region5
  $region4: #{unet_skip_block_output_forward.9} parent=0 // pred_region
    _
  $region5: #{unet_skip_block_output_forward.9} parent=0 // pred_fallthru
    _
  // Predicated region
  $region6: #{unet_skip_block_output_forward.9} parent=0 // pred_check
    _
  $region7: #{unet_skip_block_output_forward.9} parent=0 // pred_check_branch
    %11 = sbr.rel (0) target = $region9
  $region8: #{unet_skip_block_output_forward.9} parent=0 // pred_region
    _
  $region9: #{unet_skip_block_output_forward.9} parent=0 // pred_fallthru
    _
  // Predicated region
  $region10: #{unet_skip_block_output_forward.9} parent=0 // pred_check
    _
  $region11: #{unet_skip_block_output_forward.9} parent=0 // pred_check_branch
    %13 = sbr.rel (0) target = $region13
  $region12: #{unet_skip_block_output_forward.9} parent=0 // pred_region
    _
  $region13: #{unet_skip_block_output_forward.9} parent=0 // pred_fallthru
    _
  %p14 = scmp.eq.s32.totalorder 0, 0
  // Predicated region
  $region14: #{unet_skip_block_output_forward.9} parent=0 // pred_check
    %p15 = pneg %p14
  $region15: #{unet_skip_block_output_forward.9} parent=0 // pred_check_branch
    %17 = sbr.rel (%p15) target = $region17
  $region16: #{unet_skip_block_output_forward.9} parent=0 // pred_region
    %18 = vst [vmem:[#allocation2] sm:$0xff] 0.0
    %19 = vst [vmem:[#allocation2 + $0x8] sm:$0xff] 0.0
  $region17: #{unet_skip_block_output_forward.9} parent=0 // pred_fallthru
    _
  %v20 = vld [vmem:[%s0] sm:$0xf]
  %v21 = vld [vmem:[%s0 + $0x4] sm:$0xf]
  %v22 = vunpack.c.l.bf16 %v20
  %v23 = vunpack.c.l.bf16 %v21
  %v24 = vmax.f32 %v22, 0.0
  %v25 = vmax.f32 %v23, 0.0
  %v26 = vld [vmem:[#allocation2] sm:$0xff]
  %v27 = vld [vmem:[#allocation2 + $0x8] sm:$0xff]
  %v28 = vpack.c.bf16 %v25, %v24
  %v29 = vld [vmem:[%s1] sm:$0xf]
  %v30 = vld [vmem:[%s1 + $0x4] sm:$0xf]
  %v31 = vld [vmem:[%s1 + $0x8] sm:$0xf]
  %v32 = vld [vmem:[%s1 + $0xc] sm:$0xf]
  %v33 = vld [vmem:[%s1 + $0x10] sm:$0xf]
  %v34 = vld [vmem:[%s1 + $0x14] sm:$0xf]
  %v35 = vld [vmem:[%s1 + $0x18] sm:$0xf]
  %v36 = vld [vmem:[%s1 + $0x1c] sm:$0xf]
  %v37 = vld [vmem:[%s1 + $0x20] sm:$0xf]
  %v38 = vld [vmem:[%s1 + $0x24] sm:$0xf]
  %v39 = vld [vmem:[%s1 + $0x28] sm:$0xf]
  %v40 = vld [vmem:[%s1 + $0x2c] sm:$0xf]
  %v41 = vld [vmem:[%s1 + $0x30] sm:$0xf]
  %v42 = vld [vmem:[%s1 + $0x34] sm:$0xf]
  %v43 = vld [vmem:[%s1 + $0x38] sm:$0xf]
  %v44 = vld [vmem:[%s1 + $0x3c] sm:$0xf]
  %v61 = vunpack.c.l.b16 %v29
  %v62 = vunpack.c.l.b16 %v30
  %v63 = vunpack.c.l.b16 %v31
  %v64 = vunpack.c.l.b16 %v32
  %v65 = vunpack.c.l.b16 %v33
  %v66 = vunpack.c.l.b16 %v34
  %v67 = vunpack.c.l.b16 %v35
  %v68 = vunpack.c.l.b16 %v36
  %v69 = vunpack.c.l.b16 %v37
  %v70 = vunpack.c.l.b16 %v38
  %v71 = vunpack.c.l.b16 %v39
  %v72 = vunpack.c.l.b16 %v40
  %v73 = vunpack.c.l.b16 %v41
  %v74 = vunpack.c.l.b16 %v42
  %v75 = vunpack.c.l.b16 %v43
  %v76 = vunpack.c.l.b16 %v44
  %v77 = vpack.c.b16 %v62, %v61
  %v78 = vpack.c.b16 %v64, %v63
  %v79 = vpack.c.b16 %v66, %v65
  %v80 = vpack.c.b16 %v68, %v67
  %v81 = vpack.c.b16 %v70, %v69
  %v82 = vpack.c.b16 %v72, %v71
  %v83 = vpack.c.b16 %v74, %v73
  %v84 = vpack.c.b16 %v76, %v75
  %93 = vmatpush.bf16.msra.mxu0 %v84
  %94 = vmatpush.bf16.msra.mxu0 %v83
  %95 = vmatpush.bf16.msra.mxu0 %v82
  %96 = vmatpush.bf16.msra.mxu0 %v81
  %97 = vmatpush.bf16.msra.mxu0 %v80
  %98 = vmatpush.bf16.msra.mxu0 %v79
  %99 = vmatpush.bf16.msra.mxu0 %v78
  %100 = vmatpush.bf16.msra.mxu0 %v77
  %101 = vmatmul.bf16.gmra.mxu0 %v28
  %v102 = vpop.f32.mrf.mxu0
  %v103 = vadd.f32 0.0, %v102
  %v104 = vpop.f32.mrf.mxu0
  %v105 = vadd.f32 0.0, %v104
  %106 = vdwg.mxu0
  %v107 = vadd.f32 %v26, %v103
  %v108 = vadd.f32 %v27, %v105
  %109 = vst [vmem:[#allocation2] sm:$0xff] %v107
  %110 = vst [vmem:[#allocation2 + $0x8] sm:$0xff] %v108
  // Predicated region
  $region18: #{unet_skip_block_output_forward.9} parent=0 // pred_check
    %p111 = pneg %p14
  $region19: #{unet_skip_block_output_forward.9} parent=0 // pred_check_branch
    %113 = sbr.rel (%p111) target = $region21
  $region20: #{unet_skip_block_output_forward.9} parent=0 // pred_region
    %v114 = vld [vmem:[#allocation2] sm:$0xff]
    %v115 = vld [vmem:[#allocation2 + $0x8] sm:$0xff]
    %v116 = vld [vmem:[%s2] sm:$0x1]
    %v118 = vperm.slane %v116, 0
    %v120 = vadd.f32 %v114, %v118
    %v121 = vadd.f32 %v115, %v118
    %v122 = vpack.c.bf16 %v120, %v120
    %v123 = vpack.c.bf16 %v121, %v121
    %124 = vst [vmem:[%s3] sm:$0xf] %v122
    %125 = vst [vmem:[%s3 + $0x4] sm:$0xf] %v123
  $region21: #{unet_skip_block_output_forward.9} parent=0 // pred_fallthru
    _
  // Predicated region
  $region22: #{unet_skip_block_output_forward.9} parent=0 // pred_check
    _
  $region23: #{unet_skip_block_output_forward.9} parent=0 // pred_check_branch
    %127 = sbr.rel (0) target = $region25
  $region24: #{unet_skip_block_output_forward.9} parent=0 // pred_region
    _
  $region25: #{unet_skip_block_output_forward.9} parent=0 // pred_fallthru
    _
  // Predicated region
  $region26: #{unet_skip_block_output_forward.9} parent=0 // pred_check
    _
  $region27: #{unet_skip_block_output_forward.9} parent=0 // pred_check_branch
    %129 = sbr.rel (0) target = $region29
  $region28: #{unet_skip_block_output_forward.9} parent=0 // pred_region
    _
  $region29: #{unet_skip_block_output_forward.9} parent=0 // pred_fallthru
    _

// kernel: unet_skip_block_output_forward.10
$region0: #{unet_skip_block_output_forward.10}
  #allocation0 [shape = 'u32[]', space=smem, size = 0x4, offset = 0x4, fixed_abs, tag = 'smem constant byte address 0x4 - core index']
  #allocation1 [shape = 'u32[72,128]{1,0:T(1,128)}', space=vmem, size = 0x9000, scoped, tag = 'internal scratch']
  #allocation2 [shape = 'f32[32,128]{1,0:T(8,128)}', space=vmem, size = 0x4000, scoped, tag = 'scratch operand']
  %s0 = inlined_call_operand.vmem [shape: bf16[32,256], index: 0, kind: input, shape index: {}]
  %s1 = inlined_call_operand.vmem [shape: f32[1,256], index: 1, kind: input, shape index: {}]
  %s2 = inlined_call_operand.vmem [shape: f32[1,256], index: 2, kind: input, shape index: {}]
  %s3 = inlined_call_operand.vmem [shape: bf16[256,128], index: 3, kind: input, shape index: {}]
  %s4 = inlined_call_operand.vmem [shape: f32[1,128], index: 4, kind: input, shape index: {}]
  %s5 = inlined_call_operand.vmem [shape: bf16[32,128], index: 5, kind: output, shape index: {}]
  %s6 = sld [smem:[#allocation0]]
  $region38: #{unet_skip_block_output_forward.10} parent=0
    _
  %s8 = ssub.s32 1, %s6
  %s9 = scalar_select 0, %s8, %s6
  // Predicated region
  $region2: #{unet_skip_block_output_forward.10} parent=0 // pred_check
    _
  $region3: #{unet_skip_block_output_forward.10} parent=0 // pred_check_branch
    %11 = sbr.rel (0) target = $region5
  $region4: #{unet_skip_block_output_forward.10} parent=0 // pred_region
    _
  $region5: #{unet_skip_block_output_forward.10} parent=0 // pred_fallthru
    _
  // Predicated region
  $region6: #{unet_skip_block_output_forward.10} parent=0 // pred_check
    _
  $region7: #{unet_skip_block_output_forward.10} parent=0 // pred_check_branch
    %13 = sbr.rel (0) target = $region9
  $region8: #{unet_skip_block_output_forward.10} parent=0 // pred_region
    _
  $region9: #{unet_skip_block_output_forward.10} parent=0 // pred_fallthru
    _
  // Predicated region
  $region10: #{unet_skip_block_output_forward.10} parent=0 // pred_check
    _
  $region11: #{unet_skip_block_output_forward.10} parent=0 // pred_check_branch
    %15 = sbr.rel (0) target = $region13
  $region12: #{unet_skip_block_output_forward.10} parent=0 // pred_region
    _
  $region13: #{unet_skip_block_output_forward.10} parent=0 // pred_fallthru
    _
  // Predicated region
  $region14: #{unet_skip_block_output_forward.10} parent=0 // pred_check
    _
  $region15: #{unet_skip_block_output_forward.10} parent=0 // pred_check_branch
    %17 = sbr.rel (0) target = $region17
  $region16: #{unet_skip_block_output_forward.10} parent=0 // pred_region
    _
  $region17: #{unet_skip_block_output_forward.10} parent=0 // pred_fallthru
    _
  // Predicated region
  $region18: #{unet_skip_block_output_forward.10} parent=0 // pred_check
    _
  $region19: #{unet_skip_block_output_forward.10} parent=0 // pred_check_branch
    %19 = sbr.rel (0) target = $region21
  $region20: #{unet_skip_block_output_forward.10} parent=0 // pred_region
    _
  $region21: #{unet_skip_block_output_forward.10} parent=0 // pred_fallthru
    _
  %p20 = scmp.eq.s32.totalorder 0, 0
  // Predicated region
  $region22: #{unet_skip_block_output_forward.10} parent=0 // pred_check
    %p21 = pneg %p20
  $region23: #{unet_skip_block_output_forward.10} parent=0 // pred_check_branch
    %23 = sbr.rel (%p21) target = $region25
  $region24: #{unet_skip_block_output_forward.10} parent=0 // pred_region
    %24 = vst [vmem:[#allocation2] sm:$0xff] 0.0
    %25 = vst [vmem:[#allocation2 + $0x8] sm:$0xff] 0.0
    %26 = vst [vmem:[#allocation2 + $0x10] sm:$0xff] 0.0
    %27 = vst [vmem:[#allocation2 + $0x18] sm:$0xff] 0.0
  $region25: #{unet_skip_block_output_forward.10} parent=0 // pred_fallthru
    _
  %v28 = vld [vmem:[%s0] sm:$0xff]
  %v29 = vld [vmem:[%s0 + $0x8] sm:$0xff]
  %v30 = vld [vmem:[%s0 + $0x10] sm:$0xff]
  %v31 = vld [vmem:[%s0 + $0x18] sm:$0xff]
  %v32 = vunpack.c.l.bf16 %v28
  %v33 = vunpack.c.h.bf16 %v28
  %v34 = vunpack.c.l.bf16 %v29
  %v35 = vunpack.c.h.bf16 %v29
  %v36 = vunpack.c.l.bf16 %v30
  %v37 = vunpack.c.h.bf16 %v30
  %v38 = vunpack.c.l.bf16 %v31
  %v39 = vunpack.c.h.bf16 %v31
  %v40 = vld [vmem:[%s1] sm:$0x3]
  %v41 = vld [vmem:[%s2] sm:$0x3]
  %v43 = vperm.slane %v40, 0
  %v44 = vperm.slane %v40, 1
  %v47 = vmul.f32 %v32, %v43
  %v48 = vmul.f32 %v33, %v44
  %v49 = vmul.f32 %v34, %v43
  %v50 = vmul.f32 %v35, %v44
  %v51 = vmul.f32 %v36, %v43
  %v52 = vmul.f32 %v37, %v44
  %v53 = vmul.f32 %v38, %v43
  %v54 = vmul.f32 %v39, %v44
  %v56 = vperm.slane %v41, 0
  %v57 = vperm.slane %v41, 1
  %v60 = vadd.f32 %v47, %v56
  %v61 = vadd.f32 %v48, %v57
  %v62 = vadd.f32 %v49, %v56
  %v63 = vadd.f32 %v50, %v57
  %v64 = vadd.f32 %v51, %v56
  %v65 = vadd.f32 %v52, %v57
  %v66 = vadd.f32 %v53, %v56
  %v67 = vadd.f32 %v54, %v57
  %v68 = vmax.f32 %v60, 0.0
  %v69 = vmax.f32 %v61, 0.0
  %v70 = vmax.f32 %v62, 0.0
  %v71 = vmax.f32 %v63, 0.0
  %v72 = vmax.f32 %v64, 0.0
  %v73 = vmax.f32 %v65, 0.0
  %v74 = vmax.f32 %v66, 0.0
  %v75 = vmax.f32 %v67, 0.0
  %v76 = vld [vmem:[#allocation2] sm:$0xff]
  %v77 = vld [vmem:[#allocation2 + $0x8] sm:$0xff]
  %v78 = vld [vmem:[#allocation2 + $0x10] sm:$0xff]
  %v79 = vld [vmem:[#allocation2 + $0x18] sm:$0xff]
  %v80 = vpack.c.bf16 %v70, %v68
  %v81 = vpack.c.bf16 %v71, %v69
  %v82 = vpack.c.bf16 %v74, %v72
  %v83 = vpack.c.bf16 %v75, %v73
  %v84 = vld [vmem:[%s3] sm:$0xf]
  %v85 = vld [vmem:[%s3 + $0x4] sm:$0xf]
  %v86 = vld [vmem:[%s3 + $0x8] sm:$0xf]
  %v87 = vld [vmem:[%s3 + $0xc] sm:$0xf]
  %v88 = vld [vmem:[%s3 + $0x10] sm:$0xf]
  %v89 = vld [vmem:[%s3 + $0x14] sm:$0xf]
  %v90 = vld [vmem:[%s3 + $0x18] sm:$0xf]
  %v91 = vld [vmem:[%s3 + $0x1c] sm:$0xf]
  %v92 = vld [vmem:[%s3 + $0x20] sm:$0xf]
  %v93 = vld [vmem:[%s3 + $0x24] sm:$0xf]
  %v94 = vld [vmem:[%s3 + $0x28] sm:$0xf]
  %v95 = vld [vmem:[%s3 + $0x2c] sm:$0xf]
  %v96 = vld [vmem:[%s3 + $0x30] sm:$0xf]
  %v97 = vld [vmem:[%s3 + $0x34] sm:$0xf]
  %v98 = vld [vmem:[%s3 + $0x38] sm:$0xf]
  %v99 = vld [vmem:[%s3 + $0x3c] sm:$0xf]
  %v100 = vld [vmem:[%s3 + $0x40] sm:$0xf]
  %v101 = vld [vmem:[%s3 + $0x44] sm:$0xf]
  %v102 = vld [vmem:[%s3 + $0x48] sm:$0xf]
  %v103 = vld [vmem:[%s3 + $0x4c] sm:$0xf]
  %v104 = vld [vmem:[%s3 + $0x50] sm:$0xf]
  %v105 = vld [vmem:[%s3 + $0x54] sm:$0xf]
  %v106 = vld [vmem:[%s3 + $0x58] sm:$0xf]
  %v107 = vld [vmem:[%s3 + $0x5c] sm:$0xf]
  %v108 = vld [vmem:[%s3 + $0x60] sm:$0xf]
  %v109 = vld [vmem:[%s3 + $0x64] sm:$0xf]
  %v110 = vld [vmem:[%s3 + $0x68] sm:$0xf]
  %v111 = vld [vmem:[%s3 + $0x6c] sm:$0xf]
  %v112 = vld [vmem:[%s3 + $0x70] sm:$0xf]
  %v113 = vld [vmem:[%s3 + $0x74] sm:$0xf]
  %v114 = vld [vmem:[%s3 + $0x78] sm:$0xf]
  %v115 = vld [vmem:[%s3 + $0x7c] sm:$0xf]
  %v148 = vunpack.c.l.b16 %v84
  %v149 = vunpack.c.l.b16 %v85
  %v150 = vunpack.c.l.b16 %v86
  %v151 = vunpack.c.l.b16 %v87
  %v152 = vunpack.c.l.b16 %v88
  %v153 = vunpack.c.l.b16 %v89
  %v154 = vunpack.c.l.b16 %v90
  %v155 = vunpack.c.l.b16 %v91
  %v156 = vunpack.c.l.b16 %v92
  %v157 = vunpack.c.l.b16 %v93
  %v158 = vunpack.c.l.b16 %v94
  %v159 = vunpack.c.l.b16 %v95
  %v160 = vunpack.c.l.b16 %v96
  %v161 = vunpack.c.l.b16 %v97
  %v162 = vunpack.c.l.b16 %v98
  %v163 = vunpack.c.l.b16 %v99
  %v164 = vunpack.c.l.b16 %v100
  %v165 = vunpack.c.l.b16 %v101
  %v166 = vunpack.c.l.b16 %v102
  %v167 = vunpack.c.l.b16 %v103
  %v168 = vunpack.c.l.b16 %v104
  %v169 = vunpack.c.l.b16 %v105
  %v170 = vunpack.c.l.b16 %v106
  %v171 = vunpack.c.l.b16 %v107
  %v172 = vunpack.c.l.b16 %v108
  %v173 = vunpack.c.l.b16 %v109
  %v174 = vunpack.c.l.b16 %v110
  %v175 = vunpack.c.l.b16 %v111
  %v176 = vunpack.c.l.b16 %v112
  %v177 = vunpack.c.l.b16 %v113
  %v178 = vunpack.c.l.b16 %v114
  %v179 = vunpack.c.l.b16 %v115
  %v180 = vpack.c.b16 %v149, %v148
  %v181 = vpack.c.b16 %v151, %v150
  %v182 = vpack.c.b16 %v153, %v152
  %v183 = vpack.c.b16 %v155, %v154
  %v184 = vpack.c.b16 %v157, %v156
  %v185 = vpack.c.b16 %v159, %v158
  %v186 = vpack.c.b16 %v161, %v160
  %v187 = vpack.c.b16 %v163, %v162
  %v188 = vpack.c.b16 %v165, %v164
  %v189 = vpack.c.b16 %v167, %v166
  %v190 = vpack.c.b16 %v169, %v168
  %v191 = vpack.c.b16 %v171, %v170
  %v192 = vpack.c.b16 %v173, %v172
  %v193 = vpack.c.b16 %v175, %v174
  %v194 = vpack.c.b16 %v177, %v176
  %v195 = vpack.c.b16 %v179, %v178
  %212 = vmatpush.bf16.msra.mxu0 %v187
  %213 = vmatpush.bf16.msra.mxu0 %v186
  %214 = vmatpush.bf16.msra.mxu0 %v185
  %215 = vmatpush.bf16.msra.mxu0 %v184
  %216 = vmatpush.bf16.msra.mxu0 %v183
  %217 = vmatpush.bf16.msra.mxu0 %v182
  %218 = vmatpush.bf16.msra.mxu0 %v181
  %219 = vmatpush.bf16.msra.mxu0 %v180
  %220 = vmatmul.bf16.gmra.mxu0 %v80
  %v221 = vpop.f32.mrf.mxu0
  %v222 = vadd.f32 0.0, %v221
  %v223 = vpop.f32.mrf.mxu0
  %v224 = vadd.f32 0.0, %v223
  %225 = vmatmul.bf16.gmra.mxu0 %v82
  %v226 = vpop.f32.mrf.mxu0
  %v227 = vadd.f32 0.0, %v226
  %v228 = vpop.f32.mrf.mxu0
  %v229 = vadd.f32 0.0, %v228
  %230 = vdwg.mxu0
  %231 = vmatpush.bf16.msra.mxu0 %v195
  %232 = vmatpush.bf16.msra.mxu0 %v194
  %233 = vmatpush.bf16.msra.mxu0 %v193
  %234 = vmatpush.bf16.msra.mxu0 %v192
  %235 = vmatpush.bf16.msra.mxu0 %v191
  %236 = vmatpush.bf16.msra.mxu0 %v190
  %237 = vmatpush.bf16.msra.mxu0 %v189
  %238 = vmatpush.bf16.msra.mxu0 %v188
  %239 = vmatmul.bf16.gmra.mxu0 %v81
  %v240 = vpop.f32.mrf.mxu0
  %v241 = vadd.f32 %v222, %v240
  %v242 = vpop.f32.mrf.mxu0
  %v243 = vadd.f32 %v224, %v242
  %244 = vmatmul.bf16.gmra.mxu0 %v83
  %v245 = vpop.f32.mrf.mxu0
  %v246 = vadd.f32 %v227, %v245
  %v247 = vpop.f32.mrf.mxu0
  %v248 = vadd.f32 %v229, %v247
  %249 = vdwg.mxu0
  %v250 = vadd.f32 %v76, %v241
  %v251 = vadd.f32 %v77, %v243
  %v252 = vadd.f32 %v78, %v246
  %v253 = vadd.f32 %v79, %v248
  %254 = vst [vmem:[#allocation2] sm:$0xff] %v250
  %255 = vst [vmem:[#allocation2 + $0x8] sm:$0xff] %v251
  %256 = vst [vmem:[#allocation2 + $0x10] sm:$0xff] %v252
  %257 = vst [vmem:[#allocation2 + $0x18] sm:$0xff] %v253
  // Predicated region
  $region26: #{unet_skip_block_output_forward.10} parent=0 // pred_check
    %p258 = pneg %p20
  $region27: #{unet_skip_block_output_forward.10} parent=0 // pred_check_branch
    %260 = sbr.rel (%p258) target = $region29
  $region28: #{unet_skip_block_output_forward.10} parent=0 // pred_region
    %v261 = vld [vmem:[#allocation2] sm:$0xff]
    %v262 = vld [vmem:[#allocation2 + $0x8] sm:$0xff]
    %v263 = vld [vmem:[#allocation2 + $0x10] sm:$0xff]
    %v264 = vld [vmem:[#allocation2 + $0x18] sm:$0xff]
    %v265 = vld [vmem:[%s4] sm:$0x1]
    %v267 = vperm.slane %v265, 0
    %v269 = vadd.f32 %v261, %v267
    %v270 = vadd.f32 %v262, %v267
    %v271 = vadd.f32 %v263, %v267
    %v272 = vadd.f32 %v264, %v267
    %v273 = vpack.c.bf16 %v269, %v269
    %v274 = vpack.c.bf16 %v270, %v270
    %v275 = vpack.c.bf16 %v271, %v271
    %v276 = vpack.c.bf16 %v272, %v272
    %277 = vst [vmem:[%s5] sm:$0xf] %v273
    %278 = vst [vmem:[%s5 + $0x4] sm:$0xf] %v274
    %279 = vst [vmem:[%s5 + $0x8] sm:$0xf] %v275
    %280 = vst [vmem:[%s5 + $0xc] sm:$0xf] %v276
  $region29: #{unet_skip_block_output_forward.10} parent=0 // pred_fallthru
    _
  // Predicated region
  $region30: #{unet_skip_block_output_forward.10} parent=0 // pred_check
    _
  $region31: #{unet_skip_block_output_forward.10} parent=0 // pred_check_branch
    %282 = sbr.rel (0) target = $region33
  $region32: #{unet_skip_block_output_forward.10} parent=0 // pred_region
    _
  $region33: #{unet_skip_block_output_forward.10} parent=0 // pred_fallthru
    _
  // Predicated region
  $region34: #{unet_skip_block_output_forward.10} parent=0 // pred_check
    _
  $region35: #{unet_skip_block_output_forward.10} parent=0 // pred_check_branch
    %284 = sbr.rel (0) target = $region37
  $region36: #{unet_skip_block_output_forward.10} parent=0 // pred_region
    _
  $region37: #{unet_skip_block_output_forward.10} parent=0 // pred_fallthru
    _

// kernel: tile.8
$region0: #{tile.8}
  #allocation0 [shape = 's32[1]{0}', space=sflag, size = 0x4, scoped, tag = 'scoped memory for tile.8']
  %s0 = inlined_call_operand.vmem [shape: f32[8], index: 0, kind: input, shape index: {}]
  %s1 = inlined_call_operand.vmem [shape: f32[4,8], index: 1, kind: output, shape index: {}]
  // Predicated region
  $region2: #{tile.8} parent=0 // pred_check
    _
  $region3: #{tile.8} parent=0 // pred_check_branch
    %3 = sbr.rel (0) target = $region5
  $region4: #{tile.8} parent=0 // pred_region
    _
  $region5: #{tile.8} parent=0 // pred_fallthru
    _
  %v4 = vld [vmem:[%s0] ss:$0 sm:$0xff]
  %5 = vst [vmem:[%s1] sm:$0xf] %v4

// kernel: tile.9
$region0: #{tile.9}
  %s0 = inlined_call_operand.vmem [shape: f32[4,8], index: 0, kind: input, shape index: {}]
  %s1 = inlined_call_operand.vmem [shape: f32[1,32], index: 1, kind: output, shape index: {}]
  $region1: #{tile.9} parent=0
    #allocation0 [shape = 'u8[4096]{0}', space=vmem, size = 0x1000, scoped, tag = 'scoped mem for output reshape']
    #allocation1 [shape = 'u8[4096]{0}', space=vmem, size = 0x1000, scoped, tag = 'scoped mem for input reshape']
    %s3 = ssub.s32 16, 1
    %v4 = vld [vmem:[%s0] sm:%s3]
    %5 = vst [vmem:[#allocation1] sm:%s3] %v4
    %v6 = vld [vmem:[#allocation1] sm:$0x1]
    %vm7 = vcmask 64512
    %8 = vst.msk [vmem:[#allocation0] sm:$0x1] %vm7, %v6
    %s9 = scalar_lea.vmem [#allocation1], 3
    %v10 = vld [vmem:[%s9] sm:$0x1]
    %11 = vrot.lane.b32.xlu0 %v10, 24
    %v12 = vpop.permute.xlu0 %11
    %vm13 = vcmask 261312
    %14 = vst.msk [vmem:[#allocation0] sm:$0x1] %vm13, %v12
    %s15 = scalar_lea.vmem [#allocation1], 2
    %v16 = vld [vmem:[%s15] sm:$0x1]
    %17 = vrot.lane.b32.xlu0 %v16, 16
    %v18 = vpop.permute.xlu0 %17
    %vm19 = vcmask 195712
    %20 = vst.msk [vmem:[#allocation0] sm:$0x1] %vm19, %v18
    %s21 = scalar_lea.vmem [#allocation1], 1
    %v22 = vld [vmem:[%s21] sm:$0x1]
    %23 = vrot.lane.b32.xlu0 %v22, 8
    %v24 = vpop.permute.xlu0 %23
    %vm25 = vcmask 130112
    %26 = vst.msk [vmem:[#allocation0] sm:$0x1] %vm25, %v24
    %s28 = ssub.s32 2, 1
    %v29 = vld [vmem:[#allocation0] sm:%s28]
    %s31 = ssub.s32 2, 1
    %32 = vst [vmem:[%s1] sm:%s31] %v29

// kernel: unet_skip_block_output_forward.11
$region0: #{unet_skip_block_output_forward.11}
  #allocation0 [shape = 'u32[]', space=smem, size = 0x4, offset = 0x4, fixed_abs, tag = 'smem constant byte address 0x4 - core index']
  #allocation1 [shape = 'u32[72,128]{1,0:T(1,128)}', space=vmem, size = 0x9000, scoped, tag = 'internal scratch']
  #allocation2 [shape = 'f32[64,128]{1,0:T(8,128)}', space=vmem, size = 0x8000, scoped, tag = 'scratch operand']
  %s0 = inlined_call_operand.vmem [shape: bf16[64,128], index: 0, kind: input, shape index: {}]
  %s1 = inlined_call_operand.vmem [shape: f32[1,128], index: 1, kind: input, shape index: {}]
  %s2 = inlined_call_operand.vmem [shape: f32[1,128], index: 2, kind: input, shape index: {}]
  %s3 = inlined_call_operand.vmem [shape: bf16[128,128], index: 3, kind: input, shape index: {}]
  %s4 = inlined_call_operand.vmem [shape: f32[1,128], index: 4, kind: input, shape index: {}]
  %s5 = inlined_call_operand.vmem [shape: f32[64,128], index: 5, kind: output, shape index: {}]
  %s6 = sld [smem:[#allocation0]]
  $region38: #{unet_skip_block_output_forward.11} parent=0
    _
  %s8 = ssub.s32 1, %s6
  %s9 = scalar_select 0, %s8, %s6
  // Predicated region
  $region2: #{unet_skip_block_output_forward.11} parent=0 // pred_check
    _
  $region3: #{unet_skip_block_output_forward.11} parent=0 // pred_check_branch
    %11 = sbr.rel (0) target = $region5
  $region4: #{unet_skip_block_output_forward.11} parent=0 // pred_region
    _
  $region5: #{unet_skip_block_output_forward.11} parent=0 // pred_fallthru
    _
  // Predicated region
  $region6: #{unet_skip_block_output_forward.11} parent=0 // pred_check
    _
  $region7: #{unet_skip_block_output_forward.11} parent=0 // pred_check_branch
    %13 = sbr.rel (0) target = $region9
  $region8: #{unet_skip_block_output_forward.11} parent=0 // pred_region
    _
  $region9: #{unet_skip_block_output_forward.11} parent=0 // pred_fallthru
    _
  // Predicated region
  $region10: #{unet_skip_block_output_forward.11} parent=0 // pred_check
    _
  $region11: #{unet_skip_block_output_forward.11} parent=0 // pred_check_branch
    %15 = sbr.rel (0) target = $region13
  $region12: #{unet_skip_block_output_forward.11} parent=0 // pred_region
    _
  $region13: #{unet_skip_block_output_forward.11} parent=0 // pred_fallthru
    _
  // Predicated region
  $region14: #{unet_skip_block_output_forward.11} parent=0 // pred_check
    _
  $region15: #{unet_skip_block_output_forward.11} parent=0 // pred_check_branch
    %17 = sbr.rel (0) target = $region17
  $region16: #{unet_skip_block_output_forward.11} parent=0 // pred_region
    _
  $region17: #{unet_skip_block_output_forward.11} parent=0 // pred_fallthru
    _
  // Predicated region
  $region18: #{unet_skip_block_output_forward.11} parent=0 // pred_check
    _
  $region19: #{unet_skip_block_output_forward.11} parent=0 // pred_check_branch
    %19 = sbr.rel (0) target = $region21
  $region20: #{unet_skip_block_output_forward.11} parent=0 // pred_region
    _
  $region21: #{unet_skip_block_output_forward.11} parent=0 // pred_fallthru
    _
  %p20 = scmp.eq.s32.totalorder 0, 0
  // Predicated region
  $region22: #{unet_skip_block_output_forward.11} parent=0 // pred_check
    %p21 = pneg %p20
  $region23: #{unet_skip_block_output_forward.11} parent=0 // pred_check_branch
    %23 = sbr.rel (%p21) target = $region25
  $region24: #{unet_skip_block_output_forward.11} parent=0 // pred_region
    %24 = vst [vmem:[#allocation2] sm:$0xff] 0.0
    %25 = vst [vmem:[#allocation2 + $0x8] sm:$0xff] 0.0
    %26 = vst [vmem:[#allocation2 + $0x10] sm:$0xff] 0.0
    %27 = vst [vmem:[#allocation2 + $0x18] sm:$0xff] 0.0
    %28 = vst [vmem:[#allocation2 + $0x20] sm:$0xff] 0.0
    %29 = vst [vmem:[#allocation2 + $0x28] sm:$0xff] 0.0
    %30 = vst [vmem:[#allocation2 + $0x30] sm:$0xff] 0.0
    %31 = vst [vmem:[#allocation2 + $0x38] sm:$0xff] 0.0
  $region25: #{unet_skip_block_output_forward.11} parent=0 // pred_fallthru
    _
  %v32 = vld [vmem:[%s0] sm:$0xf]
  %v33 = vld [vmem:[%s0 + $0x4] sm:$0xf]
  %v34 = vld [vmem:[%s0 + $0x8] sm:$0xf]
  %v35 = vld [vmem:[%s0 + $0xc] sm:$0xf]
  %v36 = vld [vmem:[%s0 + $0x10] sm:$0xf]
  %v37 = vld [vmem:[%s0 + $0x14] sm:$0xf]
  %v38 = vld [vmem:[%s0 + $0x18] sm:$0xf]
  %v39 = vld [vmem:[%s0 + $0x1c] sm:$0xf]
  %v40 = vunpack.c.l.bf16 %v32
  %v41 = vunpack.c.l.bf16 %v33
  %v42 = vunpack.c.l.bf16 %v34
  %v43 = vunpack.c.l.bf16 %v35
  %v44 = vunpack.c.l.bf16 %v36
  %v45 = vunpack.c.l.bf16 %v37
  %v46 = vunpack.c.l.bf16 %v38
  %v47 = vunpack.c.l.bf16 %v39
  %v48 = vld [vmem:[%s1] sm:$0x1]
  %v49 = vld [vmem:[%s2] sm:$0x1]
  %v51 = vperm.slane %v48, 0
  %v53 = vmul.f32 %v40, %v51
  %v54 = vmul.f32 %v41, %v51
  %v55 = vmul.f32 %v42, %v51
  %v56 = vmul.f32 %v43, %v51
  %v57 = vmul.f32 %v44, %v51
  %v58 = vmul.f32 %v45, %v51
  %v59 = vmul.f32 %v46, %v51
  %v60 = vmul.f32 %v47, %v51
  %v62 = vperm.slane %v49, 0
  %v64 = vadd.f32 %v53, %v62
  %v65 = vadd.f32 %v54, %v62
  %v66 = vadd.f32 %v55, %v62
  %v67 = vadd.f32 %v56, %v62
  %v68 = vadd.f32 %v57, %v62
  %v69 = vadd.f32 %v58, %v62
  %v70 = vadd.f32 %v59, %v62
  %v71 = vadd.f32 %v60, %v62
  %v72 = vmax.f32 %v64, 0.0
  %v73 = vmax.f32 %v65, 0.0
  %v74 = vmax.f32 %v66, 0.0
  %v75 = vmax.f32 %v67, 0.0
  %v76 = vmax.f32 %v68, 0.0
  %v77 = vmax.f32 %v69, 0.0
  %v78 = vmax.f32 %v70, 0.0
  %v79 = vmax.f32 %v71, 0.0
  %v80 = vld [vmem:[#allocation2] sm:$0xff]
  %v81 = vld [vmem:[#allocation2 + $0x8] sm:$0xff]
  %v82 = vld [vmem:[#allocation2 + $0x10] sm:$0xff]
  %v83 = vld [vmem:[#allocation2 + $0x18] sm:$0xff]
  %v84 = vld [vmem:[#allocation2 + $0x20] sm:$0xff]
  %v85 = vld [vmem:[#allocation2 + $0x28] sm:$0xff]
  %v86 = vld [vmem:[#allocation2 + $0x30] sm:$0xff]
  %v87 = vld [vmem:[#allocation2 + $0x38] sm:$0xff]
  %v88 = vpack.c.bf16 %v73, %v72
  %v89 = vpack.c.bf16 %v75, %v74
  %v90 = vpack.c.bf16 %v77, %v76
  %v91 = vpack.c.bf16 %v79, %v78
  %v92 = vld [vmem:[%s3] sm:$0xf]
  %v93 = vld [vmem:[%s3 + $0x4] sm:$0xf]
  %v94 = vld [vmem:[%s3 + $0x8] sm:$0xf]
  %v95 = vld [vmem:[%s3 + $0xc] sm:$0xf]
  %v96 = vld [vmem:[%s3 + $0x10] sm:$0xf]
  %v97 = vld [vmem:[%s3 + $0x14] sm:$0xf]
  %v98 = vld [vmem:[%s3 + $0x18] sm:$0xf]
  %v99 = vld [vmem:[%s3 + $0x1c] sm:$0xf]
  %v100 = vld [vmem:[%s3 + $0x20] sm:$0xf]
  %v101 = vld [vmem:[%s3 + $0x24] sm:$0xf]
  %v102 = vld [vmem:[%s3 + $0x28] sm:$0xf]
  %v103 = vld [vmem:[%s3 + $0x2c] sm:$0xf]
  %v104 = vld [vmem:[%s3 + $0x30] sm:$0xf]
  %v105 = vld [vmem:[%s3 + $0x34] sm:$0xf]
  %v106 = vld [vmem:[%s3 + $0x38] sm:$0xf]
  %v107 = vld [vmem:[%s3 + $0x3c] sm:$0xf]
  %v124 = vunpack.c.l.b16 %v92
  %v125 = vunpack.c.l.b16 %v93
  %v126 = vunpack.c.l.b16 %v94
  %v127 = vunpack.c.l.b16 %v95
  %v128 = vunpack.c.l.b16 %v96
  %v129 = vunpack.c.l.b16 %v97
  %v130 = vunpack.c.l.b16 %v98
  %v131 = vunpack.c.l.b16 %v99
  %v132 = vunpack.c.l.b16 %v100
  %v133 = vunpack.c.l.b16 %v101
  %v134 = vunpack.c.l.b16 %v102
  %v135 = vunpack.c.l.b16 %v103
  %v136 = vunpack.c.l.b16 %v104
  %v137 = vunpack.c.l.b16 %v105
  %v138 = vunpack.c.l.b16 %v106
  %v139 = vunpack.c.l.b16 %v107
  %v140 = vpack.c.b16 %v125, %v124
  %v141 = vpack.c.b16 %v127, %v126
  %v142 = vpack.c.b16 %v129, %v128
  %v143 = vpack.c.b16 %v131, %v130
  %v144 = vpack.c.b16 %v133, %v132
  %v145 = vpack.c.b16 %v135, %v134
  %v146 = vpack.c.b16 %v137, %v136
  %v147 = vpack.c.b16 %v139, %v138
  %156 = vmatpush.bf16.msra.mxu0 %v147
  %157 = vmatpush.bf16.msra.mxu0 %v146
  %158 = vmatpush.bf16.msra.mxu0 %v145
  %159 = vmatpush.bf16.msra.mxu0 %v144
  %160 = vmatpush.bf16.msra.mxu0 %v143
  %161 = vmatpush.bf16.msra.mxu0 %v142
  %162 = vmatpush.bf16.msra.mxu0 %v141
  %163 = vmatpush.bf16.msra.mxu0 %v140
  %164 = vmatmul.bf16.gmra.mxu0 %v88
  %v165 = vpop.f32.mrf.mxu0
  %v166 = vadd.f32 0.0, %v165
  %v167 = vpop.f32.mrf.mxu0
  %v168 = vadd.f32 0.0, %v167
  %169 = vmatmul.bf16.gmra.mxu0 %v89
  %v170 = vpop.f32.mrf.mxu0
  %v171 = vadd.f32 0.0, %v170
  %v172 = vpop.f32.mrf.mxu0
  %v173 = vadd.f32 0.0, %v172
  %174 = vmatmul.bf16.gmra.mxu0 %v90
  %v175 = vpop.f32.mrf.mxu0
  %v176 = vadd.f32 0.0, %v175
  %v177 = vpop.f32.mrf.mxu0
  %v178 = vadd.f32 0.0, %v177
  %179 = vmatmul.bf16.gmra.mxu0 %v91
  %v180 = vpop.f32.mrf.mxu0
  %v181 = vadd.f32 0.0, %v180
  %v182 = vpop.f32.mrf.mxu0
  %v183 = vadd.f32 0.0, %v182
  %184 = vdwg.mxu0
  %v185 = vadd.f32 %v80, %v166
  %v186 = vadd.f32 %v81, %v168
  %v187 = vadd.f32 %v82, %v171
  %v188 = vadd.f32 %v83, %v173
  %v189 = vadd.f32 %v84, %v176
  %v190 = vadd.f32 %v85, %v178
  %v191 = vadd.f32 %v86, %v181
  %v192 = vadd.f32 %v87, %v183
  %193 = vst [vmem:[#allocation2] sm:$0xff] %v185
  %194 = vst [vmem:[#allocation2 + $0x8] sm:$0xff] %v186
  %195 = vst [vmem:[#allocation2 + $0x10] sm:$0xff] %v187
  %196 = vst [vmem:[#allocation2 + $0x18] sm:$0xff] %v188
  %197 = vst [vmem:[#allocation2 + $0x20] sm:$0xff] %v189
  %198 = vst [vmem:[#allocation2 + $0x28] sm:$0xff] %v190
  %199 = vst [vmem:[#allocation2 + $0x30] sm:$0xff] %v191
  %200 = vst [vmem:[#allocation2 + $0x38] sm:$0xff] %v192
  // Predicated region
  $region26: #{unet_skip_block_output_forward.11} parent=0 // pred_check
    %p201 = pneg %p20
  $region27: #{unet_skip_block_output_forward.11} parent=0 // pred_check_branch
    %203 = sbr.rel (%p201) target = $region29
  $region28: #{unet_skip_block_output_forward.11} parent=0 // pred_region
    %v204 = vld [vmem:[#allocation2] sm:$0xff]
    %v205 = vld [vmem:[#allocation2 + $0x8] sm:$0xff]
    %v206 = vld [vmem:[#allocation2 + $0x10] sm:$0xff]
    %v207 = vld [vmem:[#allocation2 + $0x18] sm:$0xff]
    %v208 = vld [vmem:[#allocation2 + $0x20] sm:$0xff]
    %v209 = vld [vmem:[#allocation2 + $0x28] sm:$0xff]
    %v210 = vld [vmem:[#allocation2 + $0x30] sm:$0xff]
    %v211 = vld [vmem:[#allocation2 + $0x38] sm:$0xff]
    %v212 = vld [vmem:[%s4] sm:$0x1]
    %v214 = vperm.slane %v212, 0
    %v216 = vadd.f32 %v204, %v214
    %v217 = vadd.f32 %v205, %v214
    %v218 = vadd.f32 %v206, %v214
    %v219 = vadd.f32 %v207, %v214
    %v220 = vadd.f32 %v208, %v214
    %v221 = vadd.f32 %v209, %v214
    %v222 = vadd.f32 %v210, %v214
    %v223 = vadd.f32 %v211, %v214
    %224 = vst [vmem:[%s5] sm:$0xff] %v216
    %225 = vst [vmem:[%s5 + $0x8] sm:$0xff] %v217
    %226 = vst [vmem:[%s5 + $0x10] sm:$0xff] %v218
    %227 = vst [vmem:[%s5 + $0x18] sm:$0xff] %v219
    %228 = vst [vmem:[%s5 + $0x20] sm:$0xff] %v220
    %229 = vst [vmem:[%s5 + $0x28] sm:$0xff] %v221
    %230 = vst [vmem:[%s5 + $0x30] sm:$0xff] %v222
    %231 = vst [vmem:[%s5 + $0x38] sm:$0xff] %v223
  $region29: #{unet_skip_block_output_forward.11} parent=0 // pred_fallthru
    _
  // Predicated region
  $region30: #{unet_skip_block_output_forward.11} parent=0 // pred_check
    _
  $region31: #{unet_skip_block_output_forward.11} parent=0 // pred_check_branch
    %233 = sbr.rel (0) target = $region33
  $region32: #{unet_skip_block_output_forward.11} parent=0 // pred_region
    _
  $region33: #{unet_skip_block_output_forward.11} parent=0 // pred_fallthru
    _
  // Predicated region
  $region34: #{unet_skip_block_output_forward.11} parent=0 // pred_check
    _
  $region35: #{unet_skip_block_output_forward.11} parent=0 // pred_check_branch
    %235 = sbr.rel (0) target = $region37
  $region36: #{unet_skip_block_output_forward.11} parent=0 // pred_region
    _
  $region37: #{unet_skip_block_output_forward.11} parent=0 // pred_fallthru
    _

</llo_original>
